<compile_context>
chip_gen: v7x
topology: tpu7x:2x2x1
jax: 0.10.0
libtpu: 0.0.40
codegen_flags: <defaults>
</compile_context>

<pallas_src>
import jax
import jax.numpy as jnp
from jax.experimental import pallas as pl
from jax.experimental.pallas import tpu as pltpu

BN_EPS = 1e-5


# ---------------------------------------------------------------------------
# helpers
# ---------------------------------------------------------------------------
def _bn_train(h, gamma, beta):
    """BatchNorm1d training-mode semantics: biased batch stats over axis 0."""
    mu = jnp.mean(h, axis=0, keepdims=True)
    var = jnp.mean((h - mu) ** 2, axis=0, keepdims=True)
    return gamma * (h - mu) * jax.lax.rsqrt(var + BN_EPS) + beta


def _round_up(n, m):
    return ((n + m - 1) // m) * m


def _pad_axis(a, axis, target):
    pad = target - a.shape[axis]
    if pad == 0:
        return a
    widths = [(0, 0)] * a.ndim
    widths[axis] = (0, pad)
    return jnp.pad(a, widths)


def _pick_tile(total, preferred):
    """total is a multiple of 128; return the largest 128-aligned divisor of
    `total` that is <= preferred (so tiny totals collapse to a single step)."""
    best = 128
    t = 128
    cap = min(total, preferred)
    while t <= cap:
        if total % t == 0:
            best = t
        t += 128
    return best


# ---------------------------------------------------------------------------
# Fused forward kernels.
# Grid = K tiles over input_n ("arbitrary" reduction axis), f32 accumulator
# for the fused (K, 2Z) mean|logvar projection.  The finalize step (last K
# tile) does the fused BatchNorm, reparameterization and either the decoder
# ('unsup') or the cox prognostic head ('sup') -- one kernel launch per phase.
# ---------------------------------------------------------------------------
def _encode_accumulate(k, x_ref, wml_ref, acc_ref):
    @pl.when(k == 0)
    def _():
        acc_ref[...] = jnp.zeros_like(acc_ref)

    # bf16 x bf16 on the MXU, f32 accumulation.
    acc_ref[...] += jnp.dot(x_ref[...], wml_ref[...],
                            preferred_element_type=jnp.float32)


def _finish_encode(acc, bnp_ref, eps_ref, z_dim):
    h = acc + bnp_ref[0:1, :]                                # fused bias (1, 2Z)
    ml = _bn_train(h, bnp_ref[1:2, :], bnp_ref[2:3, :])      # one BN over 2Z lanes
    mean = ml[:, :z_dim]
    logvar = ml[:, z_dim:]
    z = eps_ref[...] * jnp.exp(0.5 * logvar) + mean
    return mean, logvar, z


def _fwd_unsup_kernel(x_ref, wml_ref, bnp_ref, eps_ref, wd_ref, dp_ref,
                      mean_ref, logvar_ref, z_ref, recon_ref, acc_ref):
    k = pl.program_id(0)
    _encode_accumulate(k, x_ref, wml_ref, acc_ref)

    @pl.when(k == pl.num_programs(0) - 1)
    def _():
        mean, logvar, z = _finish_encode(acc_ref[...], bnp_ref, eps_ref,
                                         mean_ref.shape[1])
        mean_ref[...] = mean
        logvar_ref[...] = logvar
        z_ref[...] = z

        # ------------- fused decoder (runs once, weight is VMEM-resident) ---
        h = jnp.dot(z.astype(jnp.bfloat16), wd_ref[...],
                    preferred_element_type=jnp.float32) + dp_ref[0:1, :]
        h = _bn_train(h, dp_ref[1:2, :], dp_ref[2:3, :])
        recon = jax.nn.sigmoid(h)
        # write the exact (B, input_n) output (drop the zero-padded lanes here
        # instead of an extra HBM slice/copy in the wrapper).
        recon_ref[...] = recon[:, :recon_ref.shape[1]]


def _fwd_sup_kernel(x_ref, wml_ref, bnp_ref, eps_ref, clin_ref,
                    bnin_ref, w1_ref, coxp_ref,
                    mean_ref, logvar_ref, z_ref, y_ref, acc_ref):
    k = pl.program_id(0)
    _encode_accumulate(k, x_ref, wml_ref, acc_ref)

    @pl.when(k == pl.num_programs(0) - 1)
    def _():
        mean, logvar, z = _finish_encode(acc_ref[...], bnp_ref, eps_ref,
                                         mean_ref.shape[1])
        mean_ref[...] = mean
        logvar_ref[...] = logvar
        z_ref[...] = z

        # ---------------- cox layer (fused, runs once) ----------------------
        lat = _bn_train(mean, bnin_ref[0:1, :], bnin_ref[1:2, :])
        # fold the 4 clinical covariates into one MXU matmul:
        # [lat, c1..c4, 0-pad] (B, ZC)  @  [W1_lat; W1_clin; 0] (ZC, C)
        xin = jnp.concatenate([lat, clin_ref[...]], axis=-1).astype(jnp.bfloat16)
        h = jnp.dot(xin, w1_ref[...],
                    preferred_element_type=jnp.float32) + coxp_ref[0:1, :]
        h = jnp.tanh(h)
        h = _bn_train(h, coxp_ref[1:2, :], coxp_ref[2:3, :])
        # (B,C) @ (C,1) as elementwise multiply + lane reduction (XLU).
        y_ref[...] = jnp.sum(h * coxp_ref[3:4, :], axis=-1, keepdims=True)


# ---------------------------------------------------------------------------
# Wrappers: one pallas_call per phase.
# ---------------------------------------------------------------------------
def _encoder_setup(x2, params, tile_k):
    B = x2.shape[0]
    assert B % 8 == 0, "batch must be a multiple of 8 (sublane tiling + BN stats)"
    Kp, Z2 = params["wml"].shape
    Z = Z2 // 2
    # cast + lane-pad the activation once (zero pad rows of W make this exact).
    x2b = _pad_axis(x2.astype(jnp.bfloat16), 1, Kp)
    tk = _pick_tile(Kp, tile_k)
    grid = (Kp // tk,)
    x_spec = pl.BlockSpec((B, tk), lambda k: (0, k))
    w_spec = pl.BlockSpec((tk, Z2), lambda k: (k, 0))
    full = lambda shape: pl.BlockSpec(shape, lambda k: (0, 0))
    cparams = pltpu.CompilerParams(dimension_semantics=("arbitrary",),
                                   vmem_limit_bytes=32 * 1024 * 1024)
    return B, Z, Z2, x2b, grid, x_spec, w_spec, full, cparams


def forward_unsup(x2, params, eps_noise, *, tile_k=4096):
    """Returns (mean, logvar, z, recon_x2) from a single fused kernel."""
    B, Z, Z2, x2b, grid, x_spec, w_spec, full, cparams = _encoder_setup(
        x2, params, tile_k)
    Np = params["wd"].shape[1]
    input_n = params["input_n"]
    # TODO(synk): for very large input_n the resident decoder weight would need
    # an N-tiled (emit_pipeline) fallback; miRNA feature counts are tiny.
    assert Z * Np * 2 <= 8 * 1024 * 1024, "decoder weight too large to keep resident"

    out_bz = jax.ShapeDtypeStruct((B, Z), jnp.float32)
    mean, logvar, z, recon = pl.pallas_call(
        _fwd_unsup_kernel,
        out_shape=(out_bz, out_bz, out_bz,
                   jax.ShapeDtypeStruct((B, input_n), jnp.float32)),
        grid=grid,
        in_specs=[x_spec, w_spec, full((3, Z2)), full((B, Z)),
                  full((Z, Np)), full((3, Np))],
        out_specs=(full((B, Z)), full((B, Z)), full((B, Z)),
                   full((B, input_n))),
        scratch_shapes=[pltpu.VMEM((B, Z2), jnp.float32)],
        compiler_params=cparams,
    )(x2b, params["wml"], params["bnp"], eps_noise, params["wd"], params["dp"])
    return mean, logvar, z, recon


def forward_sup(x2, clin, params, eps_noise, *, tile_k=4096):
    """Returns (mean, logvar, z, prognostic_index) from a single fused kernel."""
    B, Z, Z2, x2b, grid, x_spec, w_spec, full, cparams = _encoder_setup(
        x2, params, tile_k)
    ZC, C = params["w1"].shape
    clin_pad = _pad_axis(clin.astype(jnp.float32), 1, ZC - Z)   # (B, ZC - Z)

    out_bz = jax.ShapeDtypeStruct((B, Z), jnp.float32)
    mean, logvar, z, y = pl.pallas_call(
        _fwd_sup_kernel,
        out_shape=(out_bz, out_bz, out_bz,
                   jax.ShapeDtypeStruct((B, 1), jnp.float32)),
        grid=grid,
        in_specs=[x_spec, w_spec, full((3, Z2)), full((B, Z)),
                  full((B, ZC - Z)), full((2, Z)), full((ZC, C)), full((4, C))],
        out_specs=(full((B, Z)), full((B, Z)), full((B, Z)), full((B, 1))),
        scratch_shapes=[pltpu.VMEM((B, Z2), jnp.float32)],
        compiler_params=cparams,
    )(x2b, params["wml"], params["bnp"], eps_noise,
      clin_pad, params["bnin"], params["w1"], params["coxp"])
    return mean, logvar, z, y


# ---------------------------------------------------------------------------
# Parameter construction (deterministic, PyTorch-default-style init).
# Matmul weights are stored bf16 and pre-padded to lane-aligned shapes;
# BN params are packed so each kernel gets one small param array per layer.
# ---------------------------------------------------------------------------
def init_params(key, input_n, z_dim, cox_level2_dim):
    ks = jax.random.split(key, 5)

    def linear(k, fan_in, fan_out):
        bound = 1.0 / (fan_in ** 0.5)
        kw, kb = jax.random.split(k)
        w = jax.random.uniform(kw, (fan_in, fan_out), jnp.float32, -bound, bound)
        b = jax.random.uniform(kb, (1, fan_out), jnp.float32, -bound, bound)
        return w, b

    wm, bm = linear(ks[0], input_n, z_dim)              # e_fc1_mean
    wl, bl = linear(ks[1], input_n, z_dim)              # e_fc1_logvar
    wd, bd = linear(ks[2], z_dim, input_n)              # d_fc1
    w1, b1 = linear(ks[3], z_dim + 4, cox_level2_dim)   # c_fc1
    w2 = jax.random.uniform(ks[4], (cox_level2_dim, 1), jnp.float32, -0.001, 0.001)

    Kp = _round_up(input_n, 128)          # padded input feature count
    ZC = _round_up(z_dim + 4, 128)        # padded cox-input width
    ones = lambda n: jnp.ones((1, n), jnp.float32)
    zeros = lambda n: jnp.zeros((1, n), jnp.float32)

    # Fused encoder projection: (K, 2Z) weight (zero-padded rows), bf16.
    wml = _pad_axis(jnp.concatenate([wm, wl], axis=1), 0, Kp).astype(jnp.bfloat16)
    # Packed [bias; gamma; beta] for the fused 2Z-wide BatchNorm.
    bnp = jnp.concatenate([jnp.concatenate([bm, bl], axis=1),
                           ones(2 * z_dim), zeros(2 * z_dim)], axis=0)

    # Decoder weight (zero-padded cols) + packed [bd; gamma; beta].
    wd_p = _pad_axis(wd, 1, Kp).astype(jnp.bfloat16)
    dp = jnp.concatenate([_pad_axis(bd, 1, Kp),
                          _pad_axis(ones(input_n), 1, Kp),
                          _pad_axis(zeros(input_n), 1, Kp)], axis=0)

    # Cox layer params. c_fc1 weight rows = [latent rows; 4 clin rows; 0-pad],
    # so the kernel runs one padded MXU matmul with [lat, clin, 0] input.
    bnin = jnp.concatenate([ones(z_dim), zeros(z_dim)], axis=0)          # c_bn_input
    w1p = _pad_axis(w1, 0, ZC).astype(jnp.bfloat16)                      # (ZC, C)
    coxp = jnp.concatenate([b1, ones(cox_level2_dim), zeros(cox_level2_dim),
                            w2.T], axis=0)                               # [b1;g2;bt2;w2^T]

    return dict(input_n=input_n, z_dim=z_dim, cox_dim=cox_level2_dim,
                wml=wml, bnp=bnp, wd=wd_p, dp=dp,
                bnin=bnin, w1=w1p, coxp=coxp)


# ---------------------------------------------------------------------------
# Module-level forward (glue in plain JAX, compute in the fused Pallas kernels)
# ---------------------------------------------------------------------------
def surv_omivae_forward(params, x2, c1, c2, c3, c4, eps_noise, phase="unsup"):
    if phase == "unsup":
        mean, logvar, z, recon_x2 = forward_unsup(x2, params, eps_noise)
        prognostic_index = None
    elif phase == "sup":
        clin = jnp.concatenate([c1, c2, c3, c4], axis=1).astype(jnp.float32)
        mean, logvar, z, prognostic_index = forward_sup(x2, clin, params, eps_noise)
        recon_x2 = None
    else:
        raise NotImplementedError("Phase [%s] does not exist." % phase)
    return z, recon_x2, mean, logvar, prognostic_index


# ---------------------------------------------------------------------------
# Pure-JAX reference for a sanity check.  It uses the same bf16-stored weights
# and bf16-rounded activations feeding each MXU matmul, so the only kernel vs.
# reference mismatch is accumulation/rounding order on the MXU path.
# ---------------------------------------------------------------------------
def _reference(params, x2, clin, eps_noise):
    input_n = params["input_n"]
    z_dim = params["z_dim"]
    xq = x2.astype(jnp.bfloat16).astype(jnp.float32)
    wml = params["wml"].astype(jnp.float32)[:input_n]
    bnp = params["bnp"]
    ml = _bn_train(xq @ wml + bnp[0:1], bnp[1:2], bnp[2:3])
    mean, logvar = ml[:, :z_dim], ml[:, z_dim:]
    z = eps_noise * jnp.exp(0.5 * logvar) + mean

    wd = params["wd"].astype(jnp.float32)[:, :input_n]
    dp = params["dp"][:, :input_n]
    zq = z.astype(jnp.bfloat16).astype(jnp.float32)
    recon = jax.nn.sigmoid(_bn_train(zq @ wd + dp[0:1], dp[1:2], dp[2:3]))

    bnin, coxp = params["bnin"], params["coxp"]
    lat = _bn_train(mean, bnin[0:1], bnin[1:2])
    xin = jnp.concatenate([lat, clin], axis=1)
    xinq = xin.astype(jnp.bfloat16).astype(jnp.float32)
    w1 = params["w1"].astype(jnp.float32)[:z_dim + 4]
    h = jnp.tanh(xinq @ w1 + coxp[0:1])
    h = _bn_train(h, coxp[1:2], coxp[2:3])
    y = jnp.sum(h * coxp[3:4], axis=-1, keepdims=True)
    return z, recon, mean, logvar, y


if __name__ == "__main__":
    # Small shapes consistent with the module: x2 is (batch, input_n),
    # c1..c4 are (batch, 1) clinical covariates.  input_n deliberately NOT a
    # multiple of 128 to exercise the padding / exact-output-shape path.
    B, INPUT_N, Z_DIM, COX_DIM = 8, 1000, 128, 128

    root = jax.random.PRNGKey(0)
    k_par, k_x, k_c, k_eps = jax.random.split(root, 4)

    params = init_params(k_par, INPUT_N, Z_DIM, COX_DIM)
    x2 = jax.random.normal(k_x, (B, INPUT_N), jnp.float32)
    cs = jax.random.normal(k_c, (B, 4), jnp.float32)
    c1, c2, c3, c4 = (cs[:, i:i + 1] for i in range(4))
    eps_noise = jax.random.normal(k_eps, (B, Z_DIM), jnp.float32)

    # phase='unsup' (default forward path)
    z, recon_x2, mean, logvar, _ = surv_omivae_forward(
        params, x2, c1, c2, c3, c4, eps_noise, phase="unsup")
    # phase='sup'
    _, _, _, _, prognostic_index = surv_omivae_forward(
        params, x2, c1, c2, c3, c4, eps_noise, phase="sup")

    jax.block_until_ready((z, recon_x2, mean, logvar, prognostic_index))

    # Sanity check against a pure-JAX reference.  Tolerance covers the
    # accumulation-order / rounding differences of the MXU bf16 path vs. the
    # XLA f32 reference matmuls over the same bf16-rounded operands.
    z_r, recon_r, mean_r, logvar_r, y_r = _reference(params, x2, cs, eps_noise)
    for name, got, ref in (("z", z, z_r), ("recon", recon_x2, recon_r),
                           ("mean", mean, mean_r), ("logvar", logvar, logvar_r),
                           ("prognostic", prognostic_index, y_r)):
        assert got.shape == ref.shape and got.dtype == ref.dtype, name
        err = float(jnp.max(jnp.abs(got - ref)))
        assert err < 2e-2, (name, err)

    print("KERNEL_OK")
</pallas_src>

<mosaic_0001>
module attributes {stable_mosaic.version = 11 : i64} {
  func.func @_fwd_unsup_kernel(%arg0: i32, %arg1: memref<8x1024xbf16, #tpu.memory_space<vmem>>, %arg2: memref<1024x256xbf16, #tpu.memory_space<vmem>>, %arg3: memref<3x256xf32, #tpu.memory_space<vmem>>, %arg4: memref<8x128xf32, #tpu.memory_space<vmem>>, %arg5: memref<128x1024xbf16, #tpu.memory_space<vmem>>, %arg6: memref<3x1024xf32, #tpu.memory_space<vmem>>, %arg7: memref<8x128xf32, #tpu.memory_space<vmem>>, %arg8: memref<8x128xf32, #tpu.memory_space<vmem>>, %arg9: memref<8x128xf32, #tpu.memory_space<vmem>>, %arg10: memref<8x1000xf32, #tpu.memory_space<vmem>>, %arg11: memref<8x256xf32, #tpu.memory_space<vmem>>) attributes {dimension_semantics = [#tpu.dimension_semantics<arbitrary>], iteration_bounds = array<i64: 1>, scalar_prefetch = 0 : i64, scratch_operands = 1 : i64, tpu.core_type = #tpu.core_type<tc>, window_params = [{transform_indices = @transform_0, window_bounds = array<i64: 8, 1024>}, {transform_indices = @transform_1, window_bounds = array<i64: 1024, 256>}, {pipeline_mode = #tpu.pipeline_mode<synchronous>, transform_indices = @transform_2, window_bounds = array<i64: 3, 256>}, {pipeline_mode = #tpu.pipeline_mode<synchronous>, transform_indices = @transform_3, window_bounds = array<i64: 8, 128>}, {pipeline_mode = #tpu.pipeline_mode<synchronous>, transform_indices = @transform_4, window_bounds = array<i64: 128, 1024>}, {pipeline_mode = #tpu.pipeline_mode<synchronous>, transform_indices = @transform_5, window_bounds = array<i64: 3, 1024>}, {pipeline_mode = #tpu.pipeline_mode<synchronous>, transform_indices = @transform_6, window_bounds = array<i64: 8, 128>}, {pipeline_mode = #tpu.pipeline_mode<synchronous>, transform_indices = @transform_7, window_bounds = array<i64: 8, 128>}, {pipeline_mode = #tpu.pipeline_mode<synchronous>, transform_indices = @transform_8, window_bounds = array<i64: 8, 128>}, {pipeline_mode = #tpu.pipeline_mode<synchronous>, transform_indices = @transform_9, window_bounds = array<i64: 8, 1000>}]} {
    %c0_i32 = arith.constant 0 : i32
    %0 = arith.cmpi eq, %arg0, %c0_i32 : i32
    %1 = arith.extui %0 : i1 to i32
    %c0_i32_0 = arith.constant 0 : i32
    %2 = arith.cmpi ne, %1, %c0_i32_0 : i32
    scf.if %2 {
      %cst_10 = arith.constant 0.000000e+00 : f32
      %12 = vector.broadcast %cst_10 : f32 to vector<8x256xf32>
      %c0_11 = arith.constant 0 : index
      %c0_12 = arith.constant 0 : index
      %13 = vector.load %arg11[%c0_11, %c0_12] : memref<8x256xf32, #tpu.memory_space<vmem>>, vector<8x256xf32>
      tpu.vector_store %arg11[%c0_11, %c0_12], %12 {strides = array<i32>} : memref<8x256xf32, #tpu.memory_space<vmem>>, vector<8x256xf32>,
    } else {
    }
    %c0 = arith.constant 0 : index
    %c0_1 = arith.constant 0 : index
    %3 = vector.load %arg11[%c0, %c0_1] : memref<8x256xf32, #tpu.memory_space<vmem>>, vector<8x256xf32>
    %c0_2 = arith.constant 0 : index
    %c0_3 = arith.constant 0 : index
    %4 = vector.load %arg1[%c0_2, %c0_3] : memref<8x1024xbf16, #tpu.memory_space<vmem>>, vector<8x1024xbf16>
    %c0_4 = arith.constant 0 : index
    %c0_5 = arith.constant 0 : index
    %5 = vector.load %arg2[%c0_4, %c0_5] : memref<1024x256xbf16, #tpu.memory_space<vmem>>, vector<1024x256xbf16>
    %cst = arith.constant dense<0.000000e+00> : vector<8x256xf32>
    %6 = tpu.matmul %4, %5, %cst {dimension_numbers = #tpu.dot_dimension_numbers<[1], [0], [0], [1], [0, 0, 1, 1], [], []>} : vector<8x1024xbf16>, vector<1024x256xbf16>, vector<8x256xf32> -> vector<8x256xf32>
    %7 = arith.addf %3, %6 : vector<8x256xf32>
    %c0_6 = arith.constant 0 : index
    %c0_7 = arith.constant 0 : index
    %8 = vector.load %arg11[%c0_6, %c0_7] : memref<8x256xf32, #tpu.memory_space<vmem>>, vector<8x256xf32>
    tpu.vector_store %arg11[%c0_6, %c0_7], %7 {strides = array<i32>} : memref<8x256xf32, #tpu.memory_space<vmem>>, vector<8x256xf32>,
    %c0_i32_8 = arith.constant 0 : i32
    %9 = arith.cmpi eq, %arg0, %c0_i32_8 : i32
    %10 = arith.extui %9 : i1 to i32
    %c0_i32_9 = arith.constant 0 : i32
    %11 = arith.cmpi ne, %10, %c0_i32_9 : i32
    scf.if %11 {
      %c0_10 = arith.constant 0 : index
      %c0_11 = arith.constant 0 : index
      %12 = vector.load %arg11[%c0_10, %c0_11] : memref<8x256xf32, #tpu.memory_space<vmem>>, vector<8x256xf32>
      %c0_12 = arith.constant 0 : index
      %c0_13 = arith.constant 0 : index
      %13 = vector.load %arg3[%c0_12, %c0_13] : memref<3x256xf32, #tpu.memory_space<vmem>>, vector<1x256xf32>
      %14 = vector.broadcast %13 : vector<1x256xf32> to vector<8x256xf32>
      %15 = arith.addf %12, %14 : vector<8x256xf32>
      %c1 = arith.constant 1 : index
      %c0_14 = arith.constant 0 : index
      %16 = vector.load %arg3[%c1, %c0_14] : memref<3x256xf32, #tpu.memory_space<vmem>>, vector<1x256xf32>
      %c2 = arith.constant 2 : index
      %c0_15 = arith.constant 0 : index
      %17 = vector.load %arg3[%c2, %c0_15] : memref<3x256xf32, #tpu.memory_space<vmem>>, vector<1x256xf32>
      %cst_16 = arith.constant dense<0.000000e+00> : vector<256xf32>
      %18 = vector.multi_reduction <add>, %15, %cst_16 [0] : vector<8x256xf32> to vector<256xf32>
      %19 = vector.shape_cast %18 : vector<256xf32> to vector<1x256xf32>
      %cst_17 = arith.constant 8.000000e+00 : f32
      %20 = vector.broadcast %cst_17 : f32 to vector<1x256xf32>
      %21 = arith.divf %19, %20 : vector<1x256xf32>
      %22 = vector.broadcast %21 : vector<1x256xf32> to vector<8x256xf32>
      %23 = arith.subf %15, %22 : vector<8x256xf32>
      %24 = arith.mulf %23, %23 : vector<8x256xf32>
      %cst_18 = arith.constant dense<0.000000e+00> : vector<256xf32>
      %25 = vector.multi_reduction <add>, %24, %cst_18 [0] : vector<8x256xf32> to vector<256xf32>
      %26 = vector.shape_cast %25 : vector<256xf32> to vector<1x256xf32>
      %cst_19 = arith.constant 8.000000e+00 : f32
      %27 = vector.broadcast %cst_19 : f32 to vector<1x256xf32>
      %28 = arith.divf %26, %27 : vector<1x256xf32>
      %29 = vector.broadcast %21 : vector<1x256xf32> to vector<8x256xf32>
      %30 = arith.subf %15, %29 : vector<8x256xf32>
      %31 = vector.broadcast %16 : vector<1x256xf32> to vector<8x256xf32>
      %32 = arith.mulf %31, %30 : vector<8x256xf32>
      %cst_20 = arith.constant 9.99999974E-6 : f32
      %33 = vector.broadcast %cst_20 : f32 to vector<1x256xf32>
      %34 = arith.addf %28, %33 : vector<1x256xf32>
      %35 = math.rsqrt %34 : vector<1x256xf32>
      %36 = vector.broadcast %35 : vector<1x256xf32> to vector<8x256xf32>
      %37 = arith.mulf %32, %36 : vector<8x256xf32>
      %38 = vector.broadcast %17 : vector<1x256xf32> to vector<8x256xf32>
      %39 = arith.addf %37, %38 : vector<8x256xf32>
      %40 = vector.extract_strided_slice %39 {offsets = [0, 0], sizes = [8, 128], strides = [1, 1]} : vector<8x256xf32> to vector<8x128xf32>
      %41 = vector.extract_strided_slice %39 {offsets = [0, 128], sizes = [8, 128], strides = [1, 1]} : vector<8x256xf32> to vector<8x128xf32>
      %c0_21 = arith.constant 0 : index
      %c0_22 = arith.constant 0 : index
      %42 = vector.load %arg4[%c0_21, %c0_22] : memref<8x128xf32, #tpu.memory_space<vmem>>, vector<8x128xf32>
      %cst_23 = arith.constant 5.000000e-01 : f32
      %43 = vector.broadcast %cst_23 : f32 to vector<8x128xf32>
      %44 = arith.mulf %43, %41 : vector<8x128xf32>
      %45 = math.exp %44 : vector<8x128xf32>
      %46 = arith.mulf %42, %45 : vector<8x128xf32>
      %47 = arith.addf %46, %40 : vector<8x128xf32>
      %c0_24 = arith.constant 0 : index
      %c0_25 = arith.constant 0 : index
      %48 = vector.load %arg7[%c0_24, %c0_25] : memref<8x128xf32, #tpu.memory_space<vmem>>, vector<8x128xf32>
      tpu.vector_store %arg7[%c0_24, %c0_25], %40 {strides = array<i32>} : memref<8x128xf32, #tpu.memory_space<vmem>>, vector<8x128xf32>,
      %c0_26 = arith.constant 0 : index
      %c0_27 = arith.constant 0 : index
      %49 = vector.load %arg8[%c0_26, %c0_27] : memref<8x128xf32, #tpu.memory_space<vmem>>, vector<8x128xf32>
      tpu.vector_store %arg8[%c0_26, %c0_27], %41 {strides = array<i32>} : memref<8x128xf32, #tpu.memory_space<vmem>>, vector<8x128xf32>,
      %c0_28 = arith.constant 0 : index
      %c0_29 = arith.constant 0 : index
      %50 = vector.load %arg9[%c0_28, %c0_29] : memref<8x128xf32, #tpu.memory_space<vmem>>, vector<8x128xf32>
      tpu.vector_store %arg9[%c0_28, %c0_29], %47 {strides = array<i32>} : memref<8x128xf32, #tpu.memory_space<vmem>>, vector<8x128xf32>,
      %51 = arith.truncf %47 : vector<8x128xf32> to vector<8x128xbf16>
      %c0_30 = arith.constant 0 : index
      %c0_31 = arith.constant 0 : index
      %52 = vector.load %arg5[%c0_30, %c0_31] : memref<128x1024xbf16, #tpu.memory_space<vmem>>, vector<128x1024xbf16>
      %cst_32 = arith.constant dense<0.000000e+00> : vector<8x1024xf32>
      %53 = tpu.matmul %51, %52, %cst_32 {dimension_numbers = #tpu.dot_dimension_numbers<[1], [0], [0], [1], [0, 0, 1, 1], [], []>} : vector<8x128xbf16>, vector<128x1024xbf16>, vector<8x1024xf32> -> vector<8x1024xf32>
      %c0_33 = arith.constant 0 : index
      %c0_34 = arith.constant 0 : index
      %54 = vector.load %arg6[%c0_33, %c0_34] : memref<3x1024xf32, #tpu.memory_space<vmem>>, vector<1x1024xf32>
      %55 = vector.broadcast %54 : vector<1x1024xf32> to vector<8x1024xf32>
      %56 = arith.addf %53, %55 : vector<8x1024xf32>
      %c1_35 = arith.constant 1 : index
      %c0_36 = arith.constant 0 : index
      %57 = vector.load %arg6[%c1_35, %c0_36] : memref<3x1024xf32, #tpu.memory_space<vmem>>, vector<1x1024xf32>
      %c2_37 = arith.constant 2 : index
      %c0_38 = arith.constant 0 : index
      %58 = vector.load %arg6[%c2_37, %c0_38] : memref<3x1024xf32, #tpu.memory_space<vmem>>, vector<1x1024xf32>
      %cst_39 = arith.constant dense<0.000000e+00> : vector<1024xf32>
      %59 = vector.multi_reduction <add>, %56, %cst_39 [0] : vector<8x1024xf32> to vector<1024xf32>
      %60 = vector.shape_cast %59 : vector<1024xf32> to vector<1x1024xf32>
      %cst_40 = arith.constant 8.000000e+00 : f32
      %61 = vector.broadcast %cst_40 : f32 to vector<1x1024xf32>
      %62 = arith.divf %60, %61 : vector<1x1024xf32>
      %63 = vector.broadcast %62 : vector<1x1024xf32> to vector<8x1024xf32>
      %64 = arith.subf %56, %63 : vector<8x1024xf32>
      %65 = arith.mulf %64, %64 : vector<8x1024xf32>
      %cst_41 = arith.constant dense<0.000000e+00> : vector<1024xf32>
      %66 = vector.multi_reduction <add>, %65, %cst_41 [0] : vector<8x1024xf32> to vector<1024xf32>
      %67 = vector.shape_cast %66 : vector<1024xf32> to vector<1x1024xf32>
      %cst_42 = arith.constant 8.000000e+00 : f32
      %68 = vector.broadcast %cst_42 : f32 to vector<1x1024xf32>
      %69 = arith.divf %67, %68 : vector<1x1024xf32>
      %70 = vector.broadcast %62 : vector<1x1024xf32> to vector<8x1024xf32>
      %71 = arith.subf %56, %70 : vector<8x1024xf32>
      %72 = vector.broadcast %57 : vector<1x1024xf32> to vector<8x1024xf32>
      %73 = arith.mulf %72, %71 : vector<8x1024xf32>
      %cst_43 = arith.constant 9.99999974E-6 : f32
      %74 = vector.broadcast %cst_43 : f32 to vector<1x1024xf32>
      %75 = arith.addf %69, %74 : vector<1x1024xf32>
      %76 = math.rsqrt %75 : vector<1x1024xf32>
      %77 = vector.broadcast %76 : vector<1x1024xf32> to vector<8x1024xf32>
      %78 = arith.mulf %73, %77 : vector<8x1024xf32>
      %79 = vector.broadcast %58 : vector<1x1024xf32> to vector<8x1024xf32>
      %80 = arith.addf %78, %79 : vector<8x1024xf32>
      %81 = arith.negf %80 : vector<8x1024xf32>
      %82 = math.exp %81 : vector<8x1024xf32>
      %cst_44 = arith.constant 1.000000e+00 : f32
      %83 = vector.broadcast %cst_44 : f32 to vector<8x1024xf32>
      %84 = arith.addf %83, %82 : vector<8x1024xf32>
      %85 = arith.divf %83, %84 : vector<8x1024xf32>
      %86 = vector.extract_strided_slice %85 {offsets = [0, 0], sizes = [8, 1000], strides = [1, 1]} : vector<8x1024xf32> to vector<8x1000xf32>
      %c0_45 = arith.constant 0 : index
      %c0_46 = arith.constant 0 : index
      %87 = vector.load %arg10[%c0_45, %c0_46] : memref<8x1000xf32, #tpu.memory_space<vmem>>, vector<8x1000xf32>
      tpu.vector_store %arg10[%c0_45, %c0_46], %86 {strides = array<i32>} : memref<8x1000xf32, #tpu.memory_space<vmem>>, vector<8x1000xf32>,
    } else {
    }
    return
  }
  func.func @transform_0(%arg0: i32) -> (i32, i32) {
    %c0_i32 = arith.constant 0 : i32
    %c0_i32_0 = arith.constant 0 : i32
    return %c0_i32, %arg0 : i32, i32
  }
  func.func @transform_1(%arg0: i32) -> (i32, i32) {
    %c0_i32 = arith.constant 0 : i32
    %c0_i32_0 = arith.constant 0 : i32
    return %arg0, %c0_i32 : i32, i32
  }
  func.func @transform_2(%arg0: i32) -> (i32, i32) {
    %c0_i32 = arith.constant 0 : i32
    %c0_i32_0 = arith.constant 0 : i32
    %c0_i32_1 = arith.constant 0 : i32
    return %c0_i32, %c0_i32_0 : i32, i32
  }
  func.func @transform_3(%arg0: i32) -> (i32, i32) {
    %c0_i32 = arith.constant 0 : i32
    %c0_i32_0 = arith.constant 0 : i32
    %c0_i32_1 = arith.constant 0 : i32
    return %c0_i32, %c0_i32_0 : i32, i32
  }
  func.func @transform_4(%arg0: i32) -> (i32, i32) {
    %c0_i32 = arith.constant 0 : i32
    %c0_i32_0 = arith.constant 0 : i32
    %c0_i32_1 = arith.constant 0 : i32
    return %c0_i32, %c0_i32_0 : i32, i32
  }
  func.func @transform_5(%arg0: i32) -> (i32, i32) {
    %c0_i32 = arith.constant 0 : i32
    %c0_i32_0 = arith.constant 0 : i32
    %c0_i32_1 = arith.constant 0 : i32
    return %c0_i32, %c0_i32_0 : i32, i32
  }
  func.func @transform_6(%arg0: i32) -> (i32, i32) {
    %c0_i32 = arith.constant 0 : i32
    %c0_i32_0 = arith.constant 0 : i32
    %c0_i32_1 = arith.constant 0 : i32
    return %c0_i32, %c0_i32_0 : i32, i32
  }
  func.func @transform_7(%arg0: i32) -> (i32, i32) {
    %c0_i32 = arith.constant 0 : i32
    %c0_i32_0 = arith.constant 0 : i32
    %c0_i32_1 = arith.constant 0 : i32
    return %c0_i32, %c0_i32_0 : i32, i32
  }
  func.func @transform_8(%arg0: i32) -> (i32, i32) {
    %c0_i32 = arith.constant 0 : i32
    %c0_i32_0 = arith.constant 0 : i32
    %c0_i32_1 = arith.constant 0 : i32
    return %c0_i32, %c0_i32_0 : i32, i32
  }
  func.func @transform_9(%arg0: i32) -> (i32, i32) {
    %c0_i32 = arith.constant 0 : i32
    %c0_i32_0 = arith.constant 0 : i32
    %c0_i32_1 = arith.constant 0 : i32
    return %c0_i32, %c0_i32_0 : i32, i32
  }
}

</mosaic_0001>

<llo_original>
// kernel: tpu_custom_call.1
$region0: #{tpu_custom_call.1}
  #allocation0 [shape = 'u32[]', space=smem, size = 0x4, offset = 0x4, fixed_abs, tag = 'smem constant byte address 0x4 - core index']
  #allocation1 [shape = 'u32[144,128]{1,0:T(1,128)}', space=vmem, size = 0x12000, scoped, tag = 'internal scratch']
  #allocation2 [shape = 'f32[8,256]{1,0:T(8,128)}', space=vmem, size = 0x2000, scoped, tag = 'scratch operand']
  %s0 = inlined_call_operand.hbm [shape: bf16[8,1024], index: 0, kind: input, shape index: {}]
  %s1 = inlined_call_operand.hbm [shape: bf16[1024,256], index: 1, kind: input, shape index: {}]
  %s2 = inlined_call_operand.hbm [shape: f32[3,256], index: 2, kind: input, shape index: {}]
  %s3 = inlined_call_operand.vmem [shape: f32[8,128], index: 3, kind: input, shape index: {}]
  %s4 = inlined_call_operand.hbm [shape: bf16[128,1024], index: 4, kind: input, shape index: {}]
  %s5 = inlined_call_operand.hbm [shape: f32[3,1024], index: 5, kind: input, shape index: {}]
  %s6 = inlined_call_operand.hbm [shape: f32[8,128], index: 6, kind: output, shape index: {0}]
  %s7 = inlined_call_operand.hbm [shape: f32[8,128], index: 7, kind: output, shape index: {1}]
  %s8 = inlined_call_operand.hbm [shape: f32[8,128], index: 8, kind: output, shape index: {2}]
  %s9 = inlined_call_operand.hbm [shape: f32[8,1000], index: 9, kind: output, shape index: {3}]
  %10 = xla_tuple %s6, %s7, %s8, %s9
  %s11 = sld [smem:[#allocation0]]
  $region86: #{tpu_custom_call.1} parent=0
    _
  %s13 = ssub.s32 1, %s11
  %s14 = scalar_select 0, %s13, %s11
  $region1: #{tpu_custom_call.1} parent=0
    #allocation3 [shape = 'u8[16384]{0}', space=vmem, size = 0x4000, scoped, tag = 'input window, operand 0, single buffered']
    #allocation4 [shape = 's32[1]{0}', space=sflag, size = 0x4, scoped, tag = 'scoped memory for tpu_custom_call.1']
    #allocation5 [shape = 's32[1]{0}', space=sflag, size = 0x4, scoped, tag = 'scoped memory for tpu_custom_call.1']
    #allocation6 [shape = 'u8[524288]{0}', space=vmem, size = 0x80000, scoped, tag = 'input window, operand 1, single buffered']
    #allocation7 [shape = 's32[1]{0}', space=sflag, size = 0x4, scoped, tag = 'scoped memory for tpu_custom_call.1']
    #allocation8 [shape = 'u8[4096]{0}', space=vmem, size = 0x1000, scoped, tag = 'input window, operand 2, single buffered']
    #allocation9 [shape = 'u8[262144]{0}', space=vmem, size = 0x40000, scoped, tag = 'input window, operand 4, single buffered']
    #allocation10 [shape = 's32[1]{0}', space=sflag, size = 0x4, scoped, tag = 'scoped memory for tpu_custom_call.1']
    #allocation11 [shape = 'u8[16384]{0}', space=vmem, size = 0x4000, scoped, tag = 'input window, operand 5, single buffered']
    #allocation12 [shape = 'u8[4096]{0}', space=vmem, size = 0x1000, scoped, tag = 'output window, operand 0, single buffered']
    #allocation13 [shape = 'u8[4096]{0}', space=vmem, size = 0x1000, scoped, tag = 'output window, operand 1, single buffered']
    #allocation14 [shape = 's32[1]{0}', space=sflag, size = 0x4, scoped, tag = 'scoped memory for tpu_custom_call.1']
    #allocation15 [shape = 'u8[4096]{0}', space=vmem, size = 0x1000, scoped, tag = 'output window, operand 2, single buffered']
    #allocation16 [shape = 'u8[32768]{0}', space=vmem, size = 0x8000, scoped, tag = 'output window, operand 3, single buffered']
    #allocation17 [shape = 's32[1]{0}', space=sflag, size = 0x4, scoped, tag = 'scoped memory for tpu_custom_call.1']
    %15 = vsyncpa [#allocation4], 0
    %16 = vsyncpa [#allocation7], 0
    %17 = vsyncpa [#allocation10], 0
    %18 = vsyncpa [#allocation5], 0
    %19 = vsyncpa [#allocation14], 0
    %20 = vsyncpa [#allocation17], 0
    // Predicated region
    $region2: #{tpu_custom_call.1} parent=1 // pred_check
      _
    $region3: #{tpu_custom_call.1} parent=1 // pred_check_branch
      %22 = sbr.rel (0) target = $region5
    $region4: #{tpu_custom_call.1} parent=1 // pred_region
      %s24 = ssub.s32 512, 512
      %25 = vsyncadd [#allocation4], %s24
      %s27 = sshll.u32 [#allocation3], 4
      %s28 = int_to_ptr.vmem [resolvable:$true] %s27
      %30 = dma.hbm_to_vmem [thread:$0]  %s0, 512, %s28, [#allocation4]
    $region5: #{tpu_custom_call.1} parent=1 // pred_fallthru
      _
    // Predicated region
    $region6: #{tpu_custom_call.1} parent=1 // pred_check
      _
    $region7: #{tpu_custom_call.1} parent=1 // pred_check_branch
      %32 = sbr.rel (0) target = $region9
    $region8: #{tpu_custom_call.1} parent=1 // pred_region
      %s34 = ssub.s32 16384, 16384
      %35 = vsyncadd [#allocation7], %s34
      %s36 = sshll.u32 [#allocation6], 4
      %s37 = int_to_ptr.vmem [resolvable:$true] %s36
      %42 = dma.hbm_to_vmem [thread:$0]  %s1, 16384, %s37, [#allocation7], 128, 128, 8
    $region9: #{tpu_custom_call.1} parent=1 // pred_fallthru
      _
    // Predicated region
    $region10: #{tpu_custom_call.1} parent=1 // pred_check
      _
    $region11: #{tpu_custom_call.1} parent=1 // pred_check_branch
      %44 = sbr.rel (0) target = $region13
    $region12: #{tpu_custom_call.1} parent=1 // pred_region
      %s46 = ssub.s32 128, 128
      %47 = vsyncadd [#allocation7], %s46
      %s49 = sshll.u32 [#allocation8], 4
      %s50 = int_to_ptr.vmem [resolvable:$true] %s49
      %52 = dma.hbm_to_vmem [thread:$0]  %s2, 128, %s50, [#allocation7]
    $region13: #{tpu_custom_call.1} parent=1 // pred_fallthru
      _
    // Predicated region
    $region14: #{tpu_custom_call.1} parent=1 // pred_check
      _
    $region15: #{tpu_custom_call.1} parent=1 // pred_check_branch
      %54 = sbr.rel (0) target = $region17
    $region16: #{tpu_custom_call.1} parent=1 // pred_region
      _
    $region17: #{tpu_custom_call.1} parent=1 // pred_fallthru
      _
    // Predicated region
    $region18: #{tpu_custom_call.1} parent=1 // pred_check
      _
    $region19: #{tpu_custom_call.1} parent=1 // pred_check_branch
      %56 = sbr.rel (0) target = $region21
    $region20: #{tpu_custom_call.1} parent=1 // pred_region
      %s58 = ssub.s32 8192, 8192
      %59 = vsyncadd [#allocation10], %s58
      %s60 = sshll.u32 [#allocation9], 4
      %s61 = int_to_ptr.vmem [resolvable:$true] %s60
      %66 = dma.hbm_to_vmem [thread:$0]  %s4, 8192, %s61, [#allocation10], 512, 512, 32
    $region21: #{tpu_custom_call.1} parent=1 // pred_fallthru
      _
    // Predicated region
    $region22: #{tpu_custom_call.1} parent=1 // pred_check
      _
    $region23: #{tpu_custom_call.1} parent=1 // pred_check_branch
      %68 = sbr.rel (0) target = $region25
    $region24: #{tpu_custom_call.1} parent=1 // pred_region
      %s70 = ssub.s32 512, 512
      %71 = vsyncadd [#allocation10], %s70
      %s73 = sshll.u32 [#allocation11], 4
      %s74 = int_to_ptr.vmem [resolvable:$true] %s73
      %76 = dma.hbm_to_vmem [thread:$0]  %s5, 512, %s74, [#allocation10]
    $region25: #{tpu_custom_call.1} parent=1 // pred_fallthru
      _
    // Predicated region
    $region26: #{tpu_custom_call.1} parent=1 // pred_check
      _
    $region27: #{tpu_custom_call.1} parent=1 // pred_check_branch
      %78 = sbr.rel (0) target = $region29
    $region28: #{tpu_custom_call.1} parent=1 // pred_region
      %79 = dma.done [#allocation4], 512
    $region29: #{tpu_custom_call.1} parent=1 // pred_fallthru
      _
    // Predicated region
    $region30: #{tpu_custom_call.1} parent=1 // pred_check
      _
    $region31: #{tpu_custom_call.1} parent=1 // pred_check_branch
      %81 = sbr.rel (0) target = $region33
    $region32: #{tpu_custom_call.1} parent=1 // pred_region
      %82 = dma.done [#allocation7], 16384
    $region33: #{tpu_custom_call.1} parent=1 // pred_fallthru
      _
    // Predicated region
    $region34: #{tpu_custom_call.1} parent=1 // pred_check
      _
    $region35: #{tpu_custom_call.1} parent=1 // pred_check_branch
      %84 = sbr.rel (0) target = $region37
    $region36: #{tpu_custom_call.1} parent=1 // pred_region
      %85 = dma.done [#allocation7], 128
    $region37: #{tpu_custom_call.1} parent=1 // pred_fallthru
      _
    // Predicated region
    $region38: #{tpu_custom_call.1} parent=1 // pred_check
      _
    $region39: #{tpu_custom_call.1} parent=1 // pred_check_branch
      %87 = sbr.rel (0) target = $region41
    $region40: #{tpu_custom_call.1} parent=1 // pred_region
      %88 = dma.done [#allocation10], 8192
    $region41: #{tpu_custom_call.1} parent=1 // pred_fallthru
      _
    // Predicated region
    $region42: #{tpu_custom_call.1} parent=1 // pred_check
      _
    $region43: #{tpu_custom_call.1} parent=1 // pred_check_branch
      %90 = sbr.rel (0) target = $region45
    $region44: #{tpu_custom_call.1} parent=1 // pred_region
      %91 = dma.done [#allocation10], 512
    $region45: #{tpu_custom_call.1} parent=1 // pred_fallthru
      _
    %p93 = scmp.eq.s32.totalorder 0, 0
    // Predicated region
    $region46: #{tpu_custom_call.1} parent=1 // pred_check
      %p94 = pneg %p93
    $region47: #{tpu_custom_call.1} parent=1 // pred_check_branch
      %96 = sbr.rel (%p94) target = $region49
    $region48: #{tpu_custom_call.1} parent=1 // pred_region
      %97 = vst [vmem:[#allocation2] sm:$0xff] 0.0
      %98 = vst [vmem:[#allocation2 + $0x8] sm:$0xff] 0.0
    $region49: #{tpu_custom_call.1} parent=1 // pred_fallthru
      _
    %v99 = vld [vmem:[#allocation2] sm:$0xff]
    %v100 = vld [vmem:[#allocation2 + $0x8] sm:$0xff]
    %v101 = vld [vmem:[#allocation3] sm:$0xff]
    %v102 = vld [vmem:[#allocation3 + $0x8] sm:$0xff]
    %v103 = vld [vmem:[#allocation3 + $0x10] sm:$0xff]
    %v104 = vld [vmem:[#allocation3 + $0x18] sm:$0xff]
    %v105 = vld [vmem:[#allocation6] sm:$0xff]
    %v106 = vld [vmem:[#allocation6 + $0x8] sm:$0xff]
    %v107 = vld [vmem:[#allocation6 + $0x10] sm:$0xff]
    %v108 = vld [vmem:[#allocation6 + $0x18] sm:$0xff]
    %v109 = vld [vmem:[#allocation6 + $0x20] sm:$0xff]
    %v110 = vld [vmem:[#allocation6 + $0x28] sm:$0xff]
    %v111 = vld [vmem:[#allocation6 + $0x30] sm:$0xff]
    %v112 = vld [vmem:[#allocation6 + $0x38] sm:$0xff]
    %v113 = vld [vmem:[#allocation6 + $0x40] sm:$0xff]
    %v114 = vld [vmem:[#allocation6 + $0x48] sm:$0xff]
    %v115 = vld [vmem:[#allocation6 + $0x50] sm:$0xff]
    %v116 = vld [vmem:[#allocation6 + $0x58] sm:$0xff]
    %v117 = vld [vmem:[#allocation6 + $0x60] sm:$0xff]
    %v118 = vld [vmem:[#allocation6 + $0x68] sm:$0xff]
    %v119 = vld [vmem:[#allocation6 + $0x70] sm:$0xff]
    %v120 = vld [vmem:[#allocation6 + $0x78] sm:$0xff]
    %v121 = vld [vmem:[#allocation6 + $0x80] sm:$0xff]
    %v122 = vld [vmem:[#allocation6 + $0x88] sm:$0xff]
    %v123 = vld [vmem:[#allocation6 + $0x90] sm:$0xff]
    %v124 = vld [vmem:[#allocation6 + $0x98] sm:$0xff]
    %v125 = vld [vmem:[#allocation6 + $0xa0] sm:$0xff]
    %v126 = vld [vmem:[#allocation6 + $0xa8] sm:$0xff]
    %v127 = vld [vmem:[#allocation6 + $0xb0] sm:$0xff]
    %v128 = vld [vmem:[#allocation6 + $0xb8] sm:$0xff]
    %v129 = vld [vmem:[#allocation6 + $0xc0] sm:$0xff]
    %v130 = vld [vmem:[#allocation6 + $0xc8] sm:$0xff]
    %v131 = vld [vmem:[#allocation6 + $0xd0] sm:$0xff]
    %v132 = vld [vmem:[#allocation6 + $0xd8] sm:$0xff]
    %v133 = vld [vmem:[#allocation6 + $0xe0] sm:$0xff]
    %v134 = vld [vmem:[#allocation6 + $0xe8] sm:$0xff]
    %v135 = vld [vmem:[#allocation6 + $0xf0] sm:$0xff]
    %v136 = vld [vmem:[#allocation6 + $0xf8] sm:$0xff]
    %v137 = vld [vmem:[#allocation6 + $0x100] sm:$0xff]
    %v138 = vld [vmem:[#allocation6 + $0x108] sm:$0xff]
    %v139 = vld [vmem:[#allocation6 + $0x110] sm:$0xff]
    %v140 = vld [vmem:[#allocation6 + $0x118] sm:$0xff]
    %v141 = vld [vmem:[#allocation6 + $0x120] sm:$0xff]
    %v142 = vld [vmem:[#allocation6 + $0x128] sm:$0xff]
    %v143 = vld [vmem:[#allocation6 + $0x130] sm:$0xff]
    %v144 = vld [vmem:[#allocation6 + $0x138] sm:$0xff]
    %v145 = vld [vmem:[#allocation6 + $0x140] sm:$0xff]
    %v146 = vld [vmem:[#allocation6 + $0x148] sm:$0xff]
    %v147 = vld [vmem:[#allocation6 + $0x150] sm:$0xff]
    %v148 = vld [vmem:[#allocation6 + $0x158] sm:$0xff]
    %v149 = vld [vmem:[#allocation6 + $0x160] sm:$0xff]
    %v150 = vld [vmem:[#allocation6 + $0x168] sm:$0xff]
    %v151 = vld [vmem:[#allocation6 + $0x170] sm:$0xff]
    %v152 = vld [vmem:[#allocation6 + $0x178] sm:$0xff]
    %v153 = vld [vmem:[#allocation6 + $0x180] sm:$0xff]
    %v154 = vld [vmem:[#allocation6 + $0x188] sm:$0xff]
    %v155 = vld [vmem:[#allocation6 + $0x190] sm:$0xff]
    %v156 = vld [vmem:[#allocation6 + $0x198] sm:$0xff]
    %v157 = vld [vmem:[#allocation6 + $0x1a0] sm:$0xff]
    %v158 = vld [vmem:[#allocation6 + $0x1a8] sm:$0xff]
    %v159 = vld [vmem:[#allocation6 + $0x1b0] sm:$0xff]
    %v160 = vld [vmem:[#allocation6 + $0x1b8] sm:$0xff]
    %v161 = vld [vmem:[#allocation6 + $0x1c0] sm:$0xff]
    %v162 = vld [vmem:[#allocation6 + $0x1c8] sm:$0xff]
    %v163 = vld [vmem:[#allocation6 + $0x1d0] sm:$0xff]
    %v164 = vld [vmem:[#allocation6 + $0x1d8] sm:$0xff]
    %v165 = vld [vmem:[#allocation6 + $0x1e0] sm:$0xff]
    %v166 = vld [vmem:[#allocation6 + $0x1e8] sm:$0xff]
    %v167 = vld [vmem:[#allocation6 + $0x1f0] sm:$0xff]
    %v168 = vld [vmem:[#allocation6 + $0x1f8] sm:$0xff]
    %v169 = vld [vmem:[#allocation6 + $0x200] sm:$0xff]
    %v170 = vld [vmem:[#allocation6 + $0x208] sm:$0xff]
    %v171 = vld [vmem:[#allocation6 + $0x210] sm:$0xff]
    %v172 = vld [vmem:[#allocation6 + $0x218] sm:$0xff]
    %v173 = vld [vmem:[#allocation6 + $0x220] sm:$0xff]
    %v174 = vld [vmem:[#allocation6 + $0x228] sm:$0xff]
    %v175 = vld [vmem:[#allocation6 + $0x230] sm:$0xff]
    %v176 = vld [vmem:[#allocation6 + $0x238] sm:$0xff]
    %v177 = vld [vmem:[#allocation6 + $0x240] sm:$0xff]
    %v178 = vld [vmem:[#allocation6 + $0x248] sm:$0xff]
    %v179 = vld [vmem:[#allocation6 + $0x250] sm:$0xff]
    %v180 = vld [vmem:[#allocation6 + $0x258] sm:$0xff]
    %v181 = vld [vmem:[#allocation6 + $0x260] sm:$0xff]
    %v182 = vld [vmem:[#allocation6 + $0x268] sm:$0xff]
    %v183 = vld [vmem:[#allocation6 + $0x270] sm:$0xff]
    %v184 = vld [vmem:[#allocation6 + $0x278] sm:$0xff]
    %v185 = vld [vmem:[#allocation6 + $0x280] sm:$0xff]
    %v186 = vld [vmem:[#allocation6 + $0x288] sm:$0xff]
    %v187 = vld [vmem:[#allocation6 + $0x290] sm:$0xff]
    %v188 = vld [vmem:[#allocation6 + $0x298] sm:$0xff]
    %v189 = vld [vmem:[#allocation6 + $0x2a0] sm:$0xff]
    %v190 = vld [vmem:[#allocation6 + $0x2a8] sm:$0xff]
    %v191 = vld [vmem:[#allocation6 + $0x2b0] sm:$0xff]
    %v192 = vld [vmem:[#allocation6 + $0x2b8] sm:$0xff]
    %v193 = vld [vmem:[#allocation6 + $0x2c0] sm:$0xff]
    %v194 = vld [vmem:[#allocation6 + $0x2c8] sm:$0xff]
    %v195 = vld [vmem:[#allocation6 + $0x2d0] sm:$0xff]
    %v196 = vld [vmem:[#allocation6 + $0x2d8] sm:$0xff]
    %v197 = vld [vmem:[#allocation6 + $0x2e0] sm:$0xff]
    %v198 = vld [vmem:[#allocation6 + $0x2e8] sm:$0xff]
    %v199 = vld [vmem:[#allocation6 + $0x2f0] sm:$0xff]
    %v200 = vld [vmem:[#allocation6 + $0x2f8] sm:$0xff]
    %v201 = vld [vmem:[#allocation6 + $0x300] sm:$0xff]
    %v202 = vld [vmem:[#allocation6 + $0x308] sm:$0xff]
    %v203 = vld [vmem:[#allocation6 + $0x310] sm:$0xff]
    %v204 = vld [vmem:[#allocation6 + $0x318] sm:$0xff]
    %v205 = vld [vmem:[#allocation6 + $0x320] sm:$0xff]
    %v206 = vld [vmem:[#allocation6 + $0x328] sm:$0xff]
    %v207 = vld [vmem:[#allocation6 + $0x330] sm:$0xff]
    %v208 = vld [vmem:[#allocation6 + $0x338] sm:$0xff]
    %v209 = vld [vmem:[#allocation6 + $0x340] sm:$0xff]
    %v210 = vld [vmem:[#allocation6 + $0x348] sm:$0xff]
    %v211 = vld [vmem:[#allocation6 + $0x350] sm:$0xff]
    %v212 = vld [vmem:[#allocation6 + $0x358] sm:$0xff]
    %v213 = vld [vmem:[#allocation6 + $0x360] sm:$0xff]
    %v214 = vld [vmem:[#allocation6 + $0x368] sm:$0xff]
    %v215 = vld [vmem:[#allocation6 + $0x370] sm:$0xff]
    %v216 = vld [vmem:[#allocation6 + $0x378] sm:$0xff]
    %v217 = vld [vmem:[#allocation6 + $0x380] sm:$0xff]
    %v218 = vld [vmem:[#allocation6 + $0x388] sm:$0xff]
    %v219 = vld [vmem:[#allocation6 + $0x390] sm:$0xff]
    %v220 = vld [vmem:[#allocation6 + $0x398] sm:$0xff]
    %v221 = vld [vmem:[#allocation6 + $0x3a0] sm:$0xff]
    %v222 = vld [vmem:[#allocation6 + $0x3a8] sm:$0xff]
    %v223 = vld [vmem:[#allocation6 + $0x3b0] sm:$0xff]
    %v224 = vld [vmem:[#allocation6 + $0x3b8] sm:$0xff]
    %v225 = vld [vmem:[#allocation6 + $0x3c0] sm:$0xff]
    %v226 = vld [vmem:[#allocation6 + $0x3c8] sm:$0xff]
    %v227 = vld [vmem:[#allocation6 + $0x3d0] sm:$0xff]
    %v228 = vld [vmem:[#allocation6 + $0x3d8] sm:$0xff]
    %v229 = vld [vmem:[#allocation6 + $0x3e0] sm:$0xff]
    %v230 = vld [vmem:[#allocation6 + $0x3e8] sm:$0xff]
    %v231 = vld [vmem:[#allocation6 + $0x3f0] sm:$0xff]
    %v232 = vld [vmem:[#allocation6 + $0x3f8] sm:$0xff]
    %v237 = vunpack.c.l.b16 %v101
    %v238 = vunpack.c.h.b16 %v101
    %v239 = vunpack.c.l.b16 %v102
    %v240 = vunpack.c.h.b16 %v102
    %v241 = vunpack.c.l.b16 %v103
    %v242 = vunpack.c.h.b16 %v103
    %v243 = vunpack.c.l.b16 %v104
    %v244 = vunpack.c.h.b16 %v104
    %v245 = vpack.c.b16 %v237, %v237
    %v246 = vpack.c.b16 %v238, %v238
    %v247 = vpack.c.b16 %v239, %v239
    %v248 = vpack.c.b16 %v240, %v240
    %v249 = vpack.c.b16 %v241, %v241
    %v250 = vpack.c.b16 %v242, %v242
    %v251 = vpack.c.b16 %v243, %v243
    %v252 = vpack.c.b16 %v244, %v244
    %v389 = vunpack.c.l.b16 %v105
    %v390 = vunpack.c.h.b16 %v105
    %v391 = vunpack.c.l.b16 %v106
    %v392 = vunpack.c.h.b16 %v106
    %v393 = vunpack.c.l.b16 %v107
    %v394 = vunpack.c.h.b16 %v107
    %v395 = vunpack.c.l.b16 %v108
    %v396 = vunpack.c.h.b16 %v108
    %v397 = vunpack.c.l.b16 %v109
    %v398 = vunpack.c.h.b16 %v109
    %v399 = vunpack.c.l.b16 %v110
    %v400 = vunpack.c.h.b16 %v110
    %v401 = vunpack.c.l.b16 %v111
    %v402 = vunpack.c.h.b16 %v111
    %v403 = vunpack.c.l.b16 %v112
    %v404 = vunpack.c.h.b16 %v112
    %v405 = vunpack.c.l.b16 %v113
    %v406 = vunpack.c.h.b16 %v113
    %v407 = vunpack.c.l.b16 %v114
    %v408 = vunpack.c.h.b16 %v114
    %v409 = vunpack.c.l.b16 %v115
    %v410 = vunpack.c.h.b16 %v115
    %v411 = vunpack.c.l.b16 %v116
    %v412 = vunpack.c.h.b16 %v116
    %v413 = vunpack.c.l.b16 %v117
    %v414 = vunpack.c.h.b16 %v117
    %v415 = vunpack.c.l.b16 %v118
    %v416 = vunpack.c.h.b16 %v118
    %v417 = vunpack.c.l.b16 %v119
    %v418 = vunpack.c.h.b16 %v119
    %v419 = vunpack.c.l.b16 %v120
    %v420 = vunpack.c.h.b16 %v120
    %v421 = vunpack.c.l.b16 %v121
    %v422 = vunpack.c.h.b16 %v121
    %v423 = vunpack.c.l.b16 %v122
    %v424 = vunpack.c.h.b16 %v122
    %v425 = vunpack.c.l.b16 %v123
    %v426 = vunpack.c.h.b16 %v123
    %v427 = vunpack.c.l.b16 %v124
    %v428 = vunpack.c.h.b16 %v124
    %v429 = vunpack.c.l.b16 %v125
    %v430 = vunpack.c.h.b16 %v125
    %v431 = vunpack.c.l.b16 %v126
    %v432 = vunpack.c.h.b16 %v126
    %v433 = vunpack.c.l.b16 %v127
    %v434 = vunpack.c.h.b16 %v127
    %v435 = vunpack.c.l.b16 %v128
    %v436 = vunpack.c.h.b16 %v128
    %v437 = vunpack.c.l.b16 %v129
    %v438 = vunpack.c.h.b16 %v129
    %v439 = vunpack.c.l.b16 %v130
    %v440 = vunpack.c.h.b16 %v130
    %v441 = vunpack.c.l.b16 %v131
    %v442 = vunpack.c.h.b16 %v131
    %v443 = vunpack.c.l.b16 %v132
    %v444 = vunpack.c.h.b16 %v132
    %v445 = vunpack.c.l.b16 %v133
    %v446 = vunpack.c.h.b16 %v133
    %v447 = vunpack.c.l.b16 %v134
    %v448 = vunpack.c.h.b16 %v134
    %v449 = vunpack.c.l.b16 %v135
    %v450 = vunpack.c.h.b16 %v135
    %v451 = vunpack.c.l.b16 %v136
    %v452 = vunpack.c.h.b16 %v136
    %v453 = vunpack.c.l.b16 %v137
    %v454 = vunpack.c.h.b16 %v137
    %v455 = vunpack.c.l.b16 %v138
    %v456 = vunpack.c.h.b16 %v138
    %v457 = vunpack.c.l.b16 %v139
    %v458 = vunpack.c.h.b16 %v139
    %v459 = vunpack.c.l.b16 %v140
    %v460 = vunpack.c.h.b16 %v140
    %v461 = vunpack.c.l.b16 %v141
    %v462 = vunpack.c.h.b16 %v141
    %v463 = vunpack.c.l.b16 %v142
    %v464 = vunpack.c.h.b16 %v142
    %v465 = vunpack.c.l.b16 %v143
    %v466 = vunpack.c.h.b16 %v143
    %v467 = vunpack.c.l.b16 %v144
    %v468 = vunpack.c.h.b16 %v144
    %v469 = vunpack.c.l.b16 %v145
    %v470 = vunpack.c.h.b16 %v145
    %v471 = vunpack.c.l.b16 %v146
    %v472 = vunpack.c.h.b16 %v146
    %v473 = vunpack.c.l.b16 %v147
    %v474 = vunpack.c.h.b16 %v147
    %v475 = vunpack.c.l.b16 %v148
    %v476 = vunpack.c.h.b16 %v148
    %v477 = vunpack.c.l.b16 %v149
    %v478 = vunpack.c.h.b16 %v149
    %v479 = vunpack.c.l.b16 %v150
    %v480 = vunpack.c.h.b16 %v150
    %v481 = vunpack.c.l.b16 %v151
    %v482 = vunpack.c.h.b16 %v151
    %v483 = vunpack.c.l.b16 %v152
    %v484 = vunpack.c.h.b16 %v152
    %v485 = vunpack.c.l.b16 %v153
    %v486 = vunpack.c.h.b16 %v153
    %v487 = vunpack.c.l.b16 %v154
    %v488 = vunpack.c.h.b16 %v154
    %v489 = vunpack.c.l.b16 %v155
    %v490 = vunpack.c.h.b16 %v155
    %v491 = vunpack.c.l.b16 %v156
    %v492 = vunpack.c.h.b16 %v156
    %v493 = vunpack.c.l.b16 %v157
    %v494 = vunpack.c.h.b16 %v157
    %v495 = vunpack.c.l.b16 %v158
    %v496 = vunpack.c.h.b16 %v158
    %v497 = vunpack.c.l.b16 %v159
    %v498 = vunpack.c.h.b16 %v159
    %v499 = vunpack.c.l.b16 %v160
    %v500 = vunpack.c.h.b16 %v160
    %v501 = vunpack.c.l.b16 %v161
    %v502 = vunpack.c.h.b16 %v161
    %v503 = vunpack.c.l.b16 %v162
    %v504 = vunpack.c.h.b16 %v162
    %v505 = vunpack.c.l.b16 %v163
    %v506 = vunpack.c.h.b16 %v163
    %v507 = vunpack.c.l.b16 %v164
    %v508 = vunpack.c.h.b16 %v164
    %v509 = vunpack.c.l.b16 %v165
    %v510 = vunpack.c.h.b16 %v165
    %v511 = vunpack.c.l.b16 %v166
    %v512 = vunpack.c.h.b16 %v166
    %v513 = vunpack.c.l.b16 %v167
    %v514 = vunpack.c.h.b16 %v167
    %v515 = vunpack.c.l.b16 %v168
    %v516 = vunpack.c.h.b16 %v168
    %v517 = vunpack.c.l.b16 %v169
    %v518 = vunpack.c.h.b16 %v169
    %v519 = vunpack.c.l.b16 %v170
    %v520 = vunpack.c.h.b16 %v170
    %v521 = vunpack.c.l.b16 %v171
    %v522 = vunpack.c.h.b16 %v171
    %v523 = vunpack.c.l.b16 %v172
    %v524 = vunpack.c.h.b16 %v172
    %v525 = vunpack.c.l.b16 %v173
    %v526 = vunpack.c.h.b16 %v173
    %v527 = vunpack.c.l.b16 %v174
    %v528 = vunpack.c.h.b16 %v174
    %v529 = vunpack.c.l.b16 %v175
    %v530 = vunpack.c.h.b16 %v175
    %v531 = vunpack.c.l.b16 %v176
    %v532 = vunpack.c.h.b16 %v176
    %v533 = vunpack.c.l.b16 %v177
    %v534 = vunpack.c.h.b16 %v177
    %v535 = vunpack.c.l.b16 %v178
    %v536 = vunpack.c.h.b16 %v178
    %v537 = vunpack.c.l.b16 %v179
    %v538 = vunpack.c.h.b16 %v179
    %v539 = vunpack.c.l.b16 %v180
    %v540 = vunpack.c.h.b16 %v180
    %v541 = vunpack.c.l.b16 %v181
    %v542 = vunpack.c.h.b16 %v181
    %v543 = vunpack.c.l.b16 %v182
    %v544 = vunpack.c.h.b16 %v182
    %v545 = vunpack.c.l.b16 %v183
    %v546 = vunpack.c.h.b16 %v183
    %v547 = vunpack.c.l.b16 %v184
    %v548 = vunpack.c.h.b16 %v184
    %v549 = vunpack.c.l.b16 %v185
    %v550 = vunpack.c.h.b16 %v185
    %v551 = vunpack.c.l.b16 %v186
    %v552 = vunpack.c.h.b16 %v186
    %v553 = vunpack.c.l.b16 %v187
    %v554 = vunpack.c.h.b16 %v187
    %v555 = vunpack.c.l.b16 %v188
    %v556 = vunpack.c.h.b16 %v188
    %v557 = vunpack.c.l.b16 %v189
    %v558 = vunpack.c.h.b16 %v189
    %v559 = vunpack.c.l.b16 %v190
    %v560 = vunpack.c.h.b16 %v190
    %v561 = vunpack.c.l.b16 %v191
    %v562 = vunpack.c.h.b16 %v191
    %v563 = vunpack.c.l.b16 %v192
    %v564 = vunpack.c.h.b16 %v192
    %v565 = vunpack.c.l.b16 %v193
    %v566 = vunpack.c.h.b16 %v193
    %v567 = vunpack.c.l.b16 %v194
    %v568 = vunpack.c.h.b16 %v194
    %v569 = vunpack.c.l.b16 %v195
    %v570 = vunpack.c.h.b16 %v195
    %v571 = vunpack.c.l.b16 %v196
    %v572 = vunpack.c.h.b16 %v196
    %v573 = vunpack.c.l.b16 %v197
    %v574 = vunpack.c.h.b16 %v197
    %v575 = vunpack.c.l.b16 %v198
    %v576 = vunpack.c.h.b16 %v198
    %v577 = vunpack.c.l.b16 %v199
    %v578 = vunpack.c.h.b16 %v199
    %v579 = vunpack.c.l.b16 %v200
    %v580 = vunpack.c.h.b16 %v200
    %v581 = vunpack.c.l.b16 %v201
    %v582 = vunpack.c.h.b16 %v201
    %v583 = vunpack.c.l.b16 %v202
    %v584 = vunpack.c.h.b16 %v202
    %v585 = vunpack.c.l.b16 %v203
    %v586 = vunpack.c.h.b16 %v203
    %v587 = vunpack.c.l.b16 %v204
    %v588 = vunpack.c.h.b16 %v204
    %v589 = vunpack.c.l.b16 %v205
    %v590 = vunpack.c.h.b16 %v205
    %v591 = vunpack.c.l.b16 %v206
    %v592 = vunpack.c.h.b16 %v206
    %v593 = vunpack.c.l.b16 %v207
    %v594 = vunpack.c.h.b16 %v207
    %v595 = vunpack.c.l.b16 %v208
    %v596 = vunpack.c.h.b16 %v208
    %v597 = vunpack.c.l.b16 %v209
    %v598 = vunpack.c.h.b16 %v209
    %v599 = vunpack.c.l.b16 %v210
    %v600 = vunpack.c.h.b16 %v210
    %v601 = vunpack.c.l.b16 %v211
    %v602 = vunpack.c.h.b16 %v211
    %v603 = vunpack.c.l.b16 %v212
    %v604 = vunpack.c.h.b16 %v212
    %v605 = vunpack.c.l.b16 %v213
    %v606 = vunpack.c.h.b16 %v213
    %v607 = vunpack.c.l.b16 %v214
    %v608 = vunpack.c.h.b16 %v214
    %v609 = vunpack.c.l.b16 %v215
    %v610 = vunpack.c.h.b16 %v215
    %v611 = vunpack.c.l.b16 %v216
    %v612 = vunpack.c.h.b16 %v216
    %v613 = vunpack.c.l.b16 %v217
    %v614 = vunpack.c.h.b16 %v217
    %v615 = vunpack.c.l.b16 %v218
    %v616 = vunpack.c.h.b16 %v218
    %v617 = vunpack.c.l.b16 %v219
    %v618 = vunpack.c.h.b16 %v219
    %v619 = vunpack.c.l.b16 %v220
    %v620 = vunpack.c.h.b16 %v220
    %v621 = vunpack.c.l.b16 %v221
    %v622 = vunpack.c.h.b16 %v221
    %v623 = vunpack.c.l.b16 %v222
    %v624 = vunpack.c.h.b16 %v222
    %v625 = vunpack.c.l.b16 %v223
    %v626 = vunpack.c.h.b16 %v223
    %v627 = vunpack.c.l.b16 %v224
    %v628 = vunpack.c.h.b16 %v224
    %v629 = vunpack.c.l.b16 %v225
    %v630 = vunpack.c.h.b16 %v225
    %v631 = vunpack.c.l.b16 %v226
    %v632 = vunpack.c.h.b16 %v226
    %v633 = vunpack.c.l.b16 %v227
    %v634 = vunpack.c.h.b16 %v227
    %v635 = vunpack.c.l.b16 %v228
    %v636 = vunpack.c.h.b16 %v228
    %v637 = vunpack.c.l.b16 %v229
    %v638 = vunpack.c.h.b16 %v229
    %v639 = vunpack.c.l.b16 %v230
    %v640 = vunpack.c.h.b16 %v230
    %v641 = vunpack.c.l.b16 %v231
    %v642 = vunpack.c.h.b16 %v231
    %v643 = vunpack.c.l.b16 %v232
    %v644 = vunpack.c.h.b16 %v232
    %v645 = vpack.c.b16 %v391, %v389
    %v646 = vpack.c.b16 %v392, %v390
    %v647 = vpack.c.b16 %v395, %v393
    %v648 = vpack.c.b16 %v396, %v394
    %v649 = vpack.c.b16 %v399, %v397
    %v650 = vpack.c.b16 %v400, %v398
    %v651 = vpack.c.b16 %v403, %v401
    %v652 = vpack.c.b16 %v404, %v402
    %v653 = vpack.c.b16 %v407, %v405
    %v654 = vpack.c.b16 %v408, %v406
    %v655 = vpack.c.b16 %v411, %v409
    %v656 = vpack.c.b16 %v412, %v410
    %v657 = vpack.c.b16 %v415, %v413
    %v658 = vpack.c.b16 %v416, %v414
    %v659 = vpack.c.b16 %v419, %v417
    %v660 = vpack.c.b16 %v420, %v418
    %v661 = vpack.c.b16 %v423, %v421
    %v662 = vpack.c.b16 %v424, %v422
    %v663 = vpack.c.b16 %v427, %v425
    %v664 = vpack.c.b16 %v428, %v426
    %v665 = vpack.c.b16 %v431, %v429
    %v666 = vpack.c.b16 %v432, %v430
    %v667 = vpack.c.b16 %v435, %v433
    %v668 = vpack.c.b16 %v436, %v434
    %v669 = vpack.c.b16 %v439, %v437
    %v670 = vpack.c.b16 %v440, %v438
    %v671 = vpack.c.b16 %v443, %v441
    %v672 = vpack.c.b16 %v444, %v442
    %v673 = vpack.c.b16 %v447, %v445
    %v674 = vpack.c.b16 %v448, %v446
    %v675 = vpack.c.b16 %v451, %v449
    %v676 = vpack.c.b16 %v452, %v450
    %v677 = vpack.c.b16 %v455, %v453
    %v678 = vpack.c.b16 %v456, %v454
    %v679 = vpack.c.b16 %v459, %v457
    %v680 = vpack.c.b16 %v460, %v458
    %v681 = vpack.c.b16 %v463, %v461
    %v682 = vpack.c.b16 %v464, %v462
    %v683 = vpack.c.b16 %v467, %v465
    %v684 = vpack.c.b16 %v468, %v466
    %v685 = vpack.c.b16 %v471, %v469
    %v686 = vpack.c.b16 %v472, %v470
    %v687 = vpack.c.b16 %v475, %v473
    %v688 = vpack.c.b16 %v476, %v474
    %v689 = vpack.c.b16 %v479, %v477
    %v690 = vpack.c.b16 %v480, %v478
    %v691 = vpack.c.b16 %v483, %v481
    %v692 = vpack.c.b16 %v484, %v482
    %v693 = vpack.c.b16 %v487, %v485
    %v694 = vpack.c.b16 %v488, %v486
    %v695 = vpack.c.b16 %v491, %v489
    %v696 = vpack.c.b16 %v492, %v490
    %v697 = vpack.c.b16 %v495, %v493
    %v698 = vpack.c.b16 %v496, %v494
    %v699 = vpack.c.b16 %v499, %v497
    %v700 = vpack.c.b16 %v500, %v498
    %v701 = vpack.c.b16 %v503, %v501
    %v702 = vpack.c.b16 %v504, %v502
    %v703 = vpack.c.b16 %v507, %v505
    %v704 = vpack.c.b16 %v508, %v506
    %v705 = vpack.c.b16 %v511, %v509
    %v706 = vpack.c.b16 %v512, %v510
    %v707 = vpack.c.b16 %v515, %v513
    %v708 = vpack.c.b16 %v516, %v514
    %v709 = vpack.c.b16 %v519, %v517
    %v710 = vpack.c.b16 %v520, %v518
    %v711 = vpack.c.b16 %v523, %v521
    %v712 = vpack.c.b16 %v524, %v522
    %v713 = vpack.c.b16 %v527, %v525
    %v714 = vpack.c.b16 %v528, %v526
    %v715 = vpack.c.b16 %v531, %v529
    %v716 = vpack.c.b16 %v532, %v530
    %v717 = vpack.c.b16 %v535, %v533
    %v718 = vpack.c.b16 %v536, %v534
    %v719 = vpack.c.b16 %v539, %v537
    %v720 = vpack.c.b16 %v540, %v538
    %v721 = vpack.c.b16 %v543, %v541
    %v722 = vpack.c.b16 %v544, %v542
    %v723 = vpack.c.b16 %v547, %v545
    %v724 = vpack.c.b16 %v548, %v546
    %v725 = vpack.c.b16 %v551, %v549
    %v726 = vpack.c.b16 %v552, %v550
    %v727 = vpack.c.b16 %v555, %v553
    %v728 = vpack.c.b16 %v556, %v554
    %v729 = vpack.c.b16 %v559, %v557
    %v730 = vpack.c.b16 %v560, %v558
    %v731 = vpack.c.b16 %v563, %v561
    %v732 = vpack.c.b16 %v564, %v562
    %v733 = vpack.c.b16 %v567, %v565
    %v734 = vpack.c.b16 %v568, %v566
    %v735 = vpack.c.b16 %v571, %v569
    %v736 = vpack.c.b16 %v572, %v570
    %v737 = vpack.c.b16 %v575, %v573
    %v738 = vpack.c.b16 %v576, %v574
    %v739 = vpack.c.b16 %v579, %v577
    %v740 = vpack.c.b16 %v580, %v578
    %v741 = vpack.c.b16 %v583, %v581
    %v742 = vpack.c.b16 %v584, %v582
    %v743 = vpack.c.b16 %v587, %v585
    %v744 = vpack.c.b16 %v588, %v586
    %v745 = vpack.c.b16 %v591, %v589
    %v746 = vpack.c.b16 %v592, %v590
    %v747 = vpack.c.b16 %v595, %v593
    %v748 = vpack.c.b16 %v596, %v594
    %v749 = vpack.c.b16 %v599, %v597
    %v750 = vpack.c.b16 %v600, %v598
    %v751 = vpack.c.b16 %v603, %v601
    %v752 = vpack.c.b16 %v604, %v602
    %v753 = vpack.c.b16 %v607, %v605
    %v754 = vpack.c.b16 %v608, %v606
    %v755 = vpack.c.b16 %v611, %v609
    %v756 = vpack.c.b16 %v612, %v610
    %v757 = vpack.c.b16 %v615, %v613
    %v758 = vpack.c.b16 %v616, %v614
    %v759 = vpack.c.b16 %v619, %v617
    %v760 = vpack.c.b16 %v620, %v618
    %v761 = vpack.c.b16 %v623, %v621
    %v762 = vpack.c.b16 %v624, %v622
    %v763 = vpack.c.b16 %v627, %v625
    %v764 = vpack.c.b16 %v628, %v626
    %v765 = vpack.c.b16 %v631, %v629
    %v766 = vpack.c.b16 %v632, %v630
    %v767 = vpack.c.b16 %v635, %v633
    %v768 = vpack.c.b16 %v636, %v634
    %v769 = vpack.c.b16 %v639, %v637
    %v770 = vpack.c.b16 %v640, %v638
    %v771 = vpack.c.b16 %v643, %v641
    %v772 = vpack.c.b16 %v644, %v642
    %901 = vmatprep.subr.bf16.mxu0 %v646
    %902 = vmatpush1.bf16.msra.mxu0 %v645
    %903 = vmatprep.subr.bf16.mxu0 %v648
    %904 = vmatpush1.bf16.msra.mxu0 %v647
    %905 = vmatprep.subr.bf16.mxu0 %v650
    %906 = vmatpush1.bf16.msra.mxu0 %v649
    %907 = vmatprep.subr.bf16.mxu0 %v652
    %908 = vmatpush1.bf16.msra.mxu0 %v651
    %909 = vmatprep.subr.bf16.mxu0 %v654
    %910 = vmatpush1.bf16.msra.mxu0 %v653
    %911 = vmatprep.subr.bf16.mxu0 %v656
    %912 = vmatpush1.bf16.msra.mxu0 %v655
    %913 = vmatprep.subr.bf16.mxu0 %v658
    %914 = vmatpush1.bf16.msra.mxu0 %v657
    %915 = vmatprep.subr.bf16.mxu0 %v660
    %916 = vmatpush1.bf16.msra.mxu0 %v659
    %917 = vmatprep.subr.bf16.mxu0 %v662
    %918 = vmatpush1.bf16.msra.mxu0 %v661
    %919 = vmatprep.subr.bf16.mxu0 %v664
    %920 = vmatpush1.bf16.msra.mxu0 %v663
    %921 = vmatprep.subr.bf16.mxu0 %v666
    %922 = vmatpush1.bf16.msra.mxu0 %v665
    %923 = vmatprep.subr.bf16.mxu0 %v668
    %924 = vmatpush1.bf16.msra.mxu0 %v667
    %925 = vmatprep.subr.bf16.mxu0 %v670
    %926 = vmatpush1.bf16.msra.mxu0 %v669
    %927 = vmatprep.subr.bf16.mxu0 %v672
    %928 = vmatpush1.bf16.msra.mxu0 %v671
    %929 = vmatprep.subr.bf16.mxu0 %v674
    %930 = vmatpush1.bf16.msra.mxu0 %v673
    %931 = vmatprep.subr.bf16.mxu0 %v676
    %932 = vmatpush1.bf16.msra.mxu0 %v675
    %933 = vmatprep.mubr.bf16.mxu0 %v246
    %934 = vmatmul.mubr.bf16.gmra.mrb[0].mxu0 %v245
    %v935 = vpop.f32.mrb[0].mxu0
    %v936 = vadd.f32 0.0, %v935
    %v937 = vpop.f32.mrb[0].mxu0
    %v938 = vadd.f32 0.0, %v937
    %v939 = vpop.f32.mrb[0].mxu0
    %v940 = vpop.f32.mrb[0].mxu0
    %941 = vdwg.mxu0
    %942 = vmatprep.subr.bf16.mxu0 %v678
    %943 = vmatpush1.bf16.msra.mxu0 %v677
    %944 = vmatprep.subr.bf16.mxu0 %v680
    %945 = vmatpush1.bf16.msra.mxu0 %v679
    %946 = vmatprep.subr.bf16.mxu0 %v682
    %947 = vmatpush1.bf16.msra.mxu0 %v681
    %948 = vmatprep.subr.bf16.mxu0 %v684
    %949 = vmatpush1.bf16.msra.mxu0 %v683
    %950 = vmatprep.subr.bf16.mxu0 %v686
    %951 = vmatpush1.bf16.msra.mxu0 %v685
    %952 = vmatprep.subr.bf16.mxu0 %v688
    %953 = vmatpush1.bf16.msra.mxu0 %v687
    %954 = vmatprep.subr.bf16.mxu0 %v690
    %955 = vmatpush1.bf16.msra.mxu0 %v689
    %956 = vmatprep.subr.bf16.mxu0 %v692
    %957 = vmatpush1.bf16.msra.mxu0 %v691
    %958 = vmatprep.subr.bf16.mxu0 %v694
    %959 = vmatpush1.bf16.msra.mxu0 %v693
    %960 = vmatprep.subr.bf16.mxu0 %v696
    %961 = vmatpush1.bf16.msra.mxu0 %v695
    %962 = vmatprep.subr.bf16.mxu0 %v698
    %963 = vmatpush1.bf16.msra.mxu0 %v697
    %964 = vmatprep.subr.bf16.mxu0 %v700
    %965 = vmatpush1.bf16.msra.mxu0 %v699
    %966 = vmatprep.subr.bf16.mxu0 %v702
    %967 = vmatpush1.bf16.msra.mxu0 %v701
    %968 = vmatprep.subr.bf16.mxu0 %v704
    %969 = vmatpush1.bf16.msra.mxu0 %v703
    %970 = vmatprep.subr.bf16.mxu0 %v706
    %971 = vmatpush1.bf16.msra.mxu0 %v705
    %972 = vmatprep.subr.bf16.mxu0 %v708
    %973 = vmatpush1.bf16.msra.mxu0 %v707
    %974 = vmatprep.mubr.bf16.mxu0 %v248
    %975 = vmatmul.mubr.bf16.gmra.mrb[0].mxu0 %v247
    %v976 = vpop.f32.mrb[0].mxu0
    %v977 = vadd.f32 %v936, %v976
    %v978 = vpop.f32.mrb[0].mxu0
    %v979 = vadd.f32 %v938, %v978
    %v980 = vpop.f32.mrb[0].mxu0
    %v981 = vpop.f32.mrb[0].mxu0
    %982 = vdwg.mxu0
    %983 = vmatprep.subr.bf16.mxu0 %v710
    %984 = vmatpush1.bf16.msra.mxu0 %v709
    %985 = vmatprep.subr.bf16.mxu0 %v712
    %986 = vmatpush1.bf16.msra.mxu0 %v711
    %987 = vmatprep.subr.bf16.mxu0 %v714
    %988 = vmatpush1.bf16.msra.mxu0 %v713
    %989 = vmatprep.subr.bf16.mxu0 %v716
    %990 = vmatpush1.bf16.msra.mxu0 %v715
    %991 = vmatprep.subr.bf16.mxu0 %v718
    %992 = vmatpush1.bf16.msra.mxu0 %v717
    %993 = vmatprep.subr.bf16.mxu0 %v720
    %994 = vmatpush1.bf16.msra.mxu0 %v719
    %995 = vmatprep.subr.bf16.mxu0 %v722
    %996 = vmatpush1.bf16.msra.mxu0 %v721
    %997 = vmatprep.subr.bf16.mxu0 %v724
    %998 = vmatpush1.bf16.msra.mxu0 %v723
    %999 = vmatprep.subr.bf16.mxu0 %v726
    %1000 = vmatpush1.bf16.msra.mxu0 %v725
    %1001 = vmatprep.subr.bf16.mxu0 %v728
    %1002 = vmatpush1.bf16.msra.mxu0 %v727
    %1003 = vmatprep.subr.bf16.mxu0 %v730
    %1004 = vmatpush1.bf16.msra.mxu0 %v729
    %1005 = vmatprep.subr.bf16.mxu0 %v732
    %1006 = vmatpush1.bf16.msra.mxu0 %v731
    %1007 = vmatprep.subr.bf16.mxu0 %v734
    %1008 = vmatpush1.bf16.msra.mxu0 %v733
    %1009 = vmatprep.subr.bf16.mxu0 %v736
    %1010 = vmatpush1.bf16.msra.mxu0 %v735
    %1011 = vmatprep.subr.bf16.mxu0 %v738
    %1012 = vmatpush1.bf16.msra.mxu0 %v737
    %1013 = vmatprep.subr.bf16.mxu0 %v740
    %1014 = vmatpush1.bf16.msra.mxu0 %v739
    %1015 = vmatprep.mubr.bf16.mxu0 %v250
    %1016 = vmatmul.mubr.bf16.gmra.mrb[0].mxu0 %v249
    %v1017 = vpop.f32.mrb[0].mxu0
    %v1018 = vadd.f32 %v977, %v1017
    %v1019 = vpop.f32.mrb[0].mxu0
    %v1020 = vadd.f32 %v979, %v1019
    %v1021 = vpop.f32.mrb[0].mxu0
    %v1022 = vpop.f32.mrb[0].mxu0
    %1023 = vdwg.mxu0
    %1024 = vmatprep.subr.bf16.mxu0 %v742
    %1025 = vmatpush1.bf16.msra.mxu0 %v741
    %1026 = vmatprep.subr.bf16.mxu0 %v744
    %1027 = vmatpush1.bf16.msra.mxu0 %v743
    %1028 = vmatprep.subr.bf16.mxu0 %v746
    %1029 = vmatpush1.bf16.msra.mxu0 %v745
    %1030 = vmatprep.subr.bf16.mxu0 %v748
    %1031 = vmatpush1.bf16.msra.mxu0 %v747
    %1032 = vmatprep.subr.bf16.mxu0 %v750
    %1033 = vmatpush1.bf16.msra.mxu0 %v749
    %1034 = vmatprep.subr.bf16.mxu0 %v752
    %1035 = vmatpush1.bf16.msra.mxu0 %v751
    %1036 = vmatprep.subr.bf16.mxu0 %v754
    %1037 = vmatpush1.bf16.msra.mxu0 %v753
    %1038 = vmatprep.subr.bf16.mxu0 %v756
    %1039 = vmatpush1.bf16.msra.mxu0 %v755
    %1040 = vmatprep.subr.bf16.mxu0 %v758
    %1041 = vmatpush1.bf16.msra.mxu0 %v757
    %1042 = vmatprep.subr.bf16.mxu0 %v760
    %1043 = vmatpush1.bf16.msra.mxu0 %v759
    %1044 = vmatprep.subr.bf16.mxu0 %v762
    %1045 = vmatpush1.bf16.msra.mxu0 %v761
    %1046 = vmatprep.subr.bf16.mxu0 %v764
    %1047 = vmatpush1.bf16.msra.mxu0 %v763
    %1048 = vmatprep.subr.bf16.mxu0 %v766
    %1049 = vmatpush1.bf16.msra.mxu0 %v765
    %1050 = vmatprep.subr.bf16.mxu0 %v768
    %1051 = vmatpush1.bf16.msra.mxu0 %v767
    %1052 = vmatprep.subr.bf16.mxu0 %v770
    %1053 = vmatpush1.bf16.msra.mxu0 %v769
    %1054 = vmatprep.subr.bf16.mxu0 %v772
    %1055 = vmatpush1.bf16.msra.mxu0 %v771
    %1056 = vmatprep.mubr.bf16.mxu0 %v252
    %1057 = vmatmul.mubr.bf16.gmra.mrb[0].mxu0 %v251
    %v1058 = vpop.f32.mrb[0].mxu0
    %v1059 = vadd.f32 %v1018, %v1058
    %v1060 = vpop.f32.mrb[0].mxu0
    %v1061 = vadd.f32 %v1020, %v1060
    %v1062 = vpop.f32.mrb[0].mxu0
    %v1063 = vpop.f32.mrb[0].mxu0
    %1064 = vdwg.mxu0
    %v1065 = vadd.f32 %v99, %v1059
    %v1066 = vadd.f32 %v100, %v1061
    %1067 = vst [vmem:[#allocation2] sm:$0xff] %v1065
    %1068 = vst [vmem:[#allocation2 + $0x8] sm:$0xff] %v1066
    // Predicated region
    $region50: #{tpu_custom_call.1} parent=1 // pred_check
      %p1069 = pneg %p93
    $region51: #{tpu_custom_call.1} parent=1 // pred_check_branch
      %1071 = sbr.rel (%p1069) target = $region53
    $region52: #{tpu_custom_call.1} parent=1 // pred_region
      %v1072 = vld [vmem:[#allocation2] sm:$0xff]
      %v1073 = vld [vmem:[#allocation2 + $0x8] sm:$0xff]
      %v1074 = vld [vmem:[#allocation8] ss:$4 sm:$0x3]
      %v1076 = vlaneseq
      %v1077 = vshrl.u32 %v1076, 7
      %v1078 = vsub.s32 0, %v1077
      %v1079 = vrot.slane %v1074, %v1078
      %v1080 = vlaneseq
      %v1081 = vshrl.u32 %v1080, 7
      %v1082 = vsub.s32 1, %v1081
      %v1083 = vrot.slane %v1074, %v1082
      %v1086 = vadd.f32 %v1072, %v1079
      %v1087 = vadd.f32 %v1073, %v1083
      %s1088 = scalar_lea.vmem [#allocation8], 1
      %v1089 = vld [vmem:[%s1088] ss:$4 sm:$0x3]
      %s1090 = scalar_lea.vmem [#allocation8], 2
      %v1091 = vld [vmem:[%s1090] ss:$4 sm:$0x3]
      %v1092 = vrot.slane %v1086, 4
      %v1093 = vadd.f32 %v1086, %v1092
      %v1094 = vrot.slane %v1093, 2
      %v1095 = vadd.f32 %v1093, %v1094
      %v1096 = vrot.slane %v1095, 1
      %v1097 = vadd.f32 %v1095, %v1096
      %v1098 = vrot.slane %v1087, 4
      %v1099 = vadd.f32 %v1087, %v1098
      %v1100 = vrot.slane %v1099, 2
      %v1101 = vadd.f32 %v1099, %v1100
      %v1102 = vrot.slane %v1101, 1
      %v1103 = vadd.f32 %v1101, %v1102
      %v1104 = vrcp.pop 8.0
      %v1105 = vmul.f32 %v1097, %v1104
      %v1106 = vmul.f32 %v1103, %v1104
      %v1107 = vsub.f32 %v1086, %v1105
      %v1108 = vsub.f32 %v1087, %v1106
      %v1109 = vmul.f32 %v1107, %v1107
      %v1110 = vmul.f32 %v1108, %v1108
      %v1111 = vrot.slane %v1109, 4
      %v1112 = vadd.f32 %v1109, %v1111
      %v1113 = vrot.slane %v1112, 2
      %v1114 = vadd.f32 %v1112, %v1113
      %v1115 = vrot.slane %v1114, 1
      %v1116 = vadd.f32 %v1114, %v1115
      %v1117 = vrot.slane %v1110, 4
      %v1118 = vadd.f32 %v1110, %v1117
      %v1119 = vrot.slane %v1118, 2
      %v1120 = vadd.f32 %v1118, %v1119
      %v1121 = vrot.slane %v1120, 1
      %v1122 = vadd.f32 %v1120, %v1121
      %v1123 = vmul.f32 %v1116, %v1104
      %v1124 = vmul.f32 %v1122, %v1104
      %v1126 = vlaneseq
      %v1127 = vshrl.u32 %v1126, 7
      %v1128 = vsub.s32 0, %v1127
      %v1129 = vrot.slane %v1089, %v1128
      %v1130 = vlaneseq
      %v1131 = vshrl.u32 %v1130, 7
      %v1132 = vsub.s32 1, %v1131
      %v1133 = vrot.slane %v1089, %v1132
      %v1136 = vmul.f32 %v1129, %v1107
      %v1137 = vmul.f32 %v1133, %v1108
      %v1138 = vadd.f32 %v1123, 1e-05
      %v1139 = vadd.f32 %v1124, 1e-05
      %v1140 = vrsqrt.pop %v1138
      %v1141 = vrsqrt.pop %v1139
      %v1142 = vmul.f32 %v1136, %v1140
      %v1143 = vmul.f32 %v1137, %v1141
      %v1145 = vlaneseq
      %v1146 = vshrl.u32 %v1145, 7
      %v1147 = vsub.s32 0, %v1146
      %v1148 = vrot.slane %v1091, %v1147
      %v1149 = vlaneseq
      %v1150 = vshrl.u32 %v1149, 7
      %v1151 = vsub.s32 1, %v1150
      %v1152 = vrot.slane %v1091, %v1151
      %v1155 = vadd.f32 %v1142, %v1148
      %v1156 = vadd.f32 %v1143, %v1152
      %v1157 = vld [vmem:[%s3] sm:$0xff]
      %v1158 = vmul.f32 %v1156, 0.5
      %v1159 = vmul.f32 %v1158, 1.442695
      %v1160 = vpow.pop %v1159
      %v1161 = vmul.f32 %v1157, %v1160
      %v1162 = vadd.f32 %v1161, %v1155
      %1163 = vst [vmem:[#allocation12] sm:$0xff] %v1155
      %1164 = vst [vmem:[#allocation13] sm:$0xff] %v1156
      %1165 = vst [vmem:[#allocation15] sm:$0xff] %v1162
      %v1166 = vpack.c.bf16 %v1162, %v1162
      %v1167 = vld [vmem:[#allocation9] sm:$0xff]
      %v1168 = vld [vmem:[#allocation9 + $0x8] sm:$0xff]
      %v1169 = vld [vmem:[#allocation9 + $0x10] sm:$0xff]
      %v1170 = vld [vmem:[#allocation9 + $0x18] sm:$0xff]
      %v1171 = vld [vmem:[#allocation9 + $0x20] sm:$0xff]
      %v1172 = vld [vmem:[#allocation9 + $0x28] sm:$0xff]
      %v1173 = vld [vmem:[#allocation9 + $0x30] sm:$0xff]
      %v1174 = vld [vmem:[#allocation9 + $0x38] sm:$0xff]
      %v1175 = vld [vmem:[#allocation9 + $0x40] sm:$0xff]
      %v1176 = vld [vmem:[#allocation9 + $0x48] sm:$0xff]
      %v1177 = vld [vmem:[#allocation9 + $0x50] sm:$0xff]
      %v1178 = vld [vmem:[#allocation9 + $0x58] sm:$0xff]
      %v1179 = vld [vmem:[#allocation9 + $0x60] sm:$0xff]
      %v1180 = vld [vmem:[#allocation9 + $0x68] sm:$0xff]
      %v1181 = vld [vmem:[#allocation9 + $0x70] sm:$0xff]
      %v1182 = vld [vmem:[#allocation9 + $0x78] sm:$0xff]
      %v1183 = vld [vmem:[#allocation9 + $0x80] sm:$0xff]
      %v1184 = vld [vmem:[#allocation9 + $0x88] sm:$0xff]
      %v1185 = vld [vmem:[#allocation9 + $0x90] sm:$0xff]
      %v1186 = vld [vmem:[#allocation9 + $0x98] sm:$0xff]
      %v1187 = vld [vmem:[#allocation9 + $0xa0] sm:$0xff]
      %v1188 = vld [vmem:[#allocation9 + $0xa8] sm:$0xff]
      %v1189 = vld [vmem:[#allocation9 + $0xb0] sm:$0xff]
      %v1190 = vld [vmem:[#allocation9 + $0xb8] sm:$0xff]
      %v1191 = vld [vmem:[#allocation9 + $0xc0] sm:$0xff]
      %v1192 = vld [vmem:[#allocation9 + $0xc8] sm:$0xff]
      %v1193 = vld [vmem:[#allocation9 + $0xd0] sm:$0xff]
      %v1194 = vld [vmem:[#allocation9 + $0xd8] sm:$0xff]
      %v1195 = vld [vmem:[#allocation9 + $0xe0] sm:$0xff]
      %v1196 = vld [vmem:[#allocation9 + $0xe8] sm:$0xff]
      %v1197 = vld [vmem:[#allocation9 + $0xf0] sm:$0xff]
      %v1198 = vld [vmem:[#allocation9 + $0xf8] sm:$0xff]
      %v1199 = vld [vmem:[#allocation9 + $0x100] sm:$0xff]
      %v1200 = vld [vmem:[#allocation9 + $0x108] sm:$0xff]
      %v1201 = vld [vmem:[#allocation9 + $0x110] sm:$0xff]
      %v1202 = vld [vmem:[#allocation9 + $0x118] sm:$0xff]
      %v1203 = vld [vmem:[#allocation9 + $0x120] sm:$0xff]
      %v1204 = vld [vmem:[#allocation9 + $0x128] sm:$0xff]
      %v1205 = vld [vmem:[#allocation9 + $0x130] sm:$0xff]
      %v1206 = vld [vmem:[#allocation9 + $0x138] sm:$0xff]
      %v1207 = vld [vmem:[#allocation9 + $0x140] sm:$0xff]
      %v1208 = vld [vmem:[#allocation9 + $0x148] sm:$0xff]
      %v1209 = vld [vmem:[#allocation9 + $0x150] sm:$0xff]
      %v1210 = vld [vmem:[#allocation9 + $0x158] sm:$0xff]
      %v1211 = vld [vmem:[#allocation9 + $0x160] sm:$0xff]
      %v1212 = vld [vmem:[#allocation9 + $0x168] sm:$0xff]
      %v1213 = vld [vmem:[#allocation9 + $0x170] sm:$0xff]
      %v1214 = vld [vmem:[#allocation9 + $0x178] sm:$0xff]
      %v1215 = vld [vmem:[#allocation9 + $0x180] sm:$0xff]
      %v1216 = vld [vmem:[#allocation9 + $0x188] sm:$0xff]
      %v1217 = vld [vmem:[#allocation9 + $0x190] sm:$0xff]
      %v1218 = vld [vmem:[#allocation9 + $0x198] sm:$0xff]
      %v1219 = vld [vmem:[#allocation9 + $0x1a0] sm:$0xff]
      %v1220 = vld [vmem:[#allocation9 + $0x1a8] sm:$0xff]
      %v1221 = vld [vmem:[#allocation9 + $0x1b0] sm:$0xff]
      %v1222 = vld [vmem:[#allocation9 + $0x1b8] sm:$0xff]
      %v1223 = vld [vmem:[#allocation9 + $0x1c0] sm:$0xff]
      %v1224 = vld [vmem:[#allocation9 + $0x1c8] sm:$0xff]
      %v1225 = vld [vmem:[#allocation9 + $0x1d0] sm:$0xff]
      %v1226 = vld [vmem:[#allocation9 + $0x1d8] sm:$0xff]
      %v1227 = vld [vmem:[#allocation9 + $0x1e0] sm:$0xff]
      %v1228 = vld [vmem:[#allocation9 + $0x1e8] sm:$0xff]
      %v1229 = vld [vmem:[#allocation9 + $0x1f0] sm:$0xff]
      %v1230 = vld [vmem:[#allocation9 + $0x1f8] sm:$0xff]
      %v1231 = vld [vmem:[#allocation11] ss:$4 sm:$0xff]
      %v1233 = vlaneseq
      %v1234 = vshrl.u32 %v1233, 7
      %v1235 = vsub.s32 0, %v1234
      %v1236 = vrot.slane %v1231, %v1235
      %v1237 = vlaneseq
      %v1238 = vshrl.u32 %v1237, 7
      %v1239 = vsub.s32 1, %v1238
      %v1240 = vrot.slane %v1231, %v1239
      %v1241 = vlaneseq
      %v1242 = vshrl.u32 %v1241, 7
      %v1243 = vsub.s32 2, %v1242
      %v1244 = vrot.slane %v1231, %v1243
      %v1245 = vlaneseq
      %v1246 = vshrl.u32 %v1245, 7
      %v1247 = vsub.s32 3, %v1246
      %v1248 = vrot.slane %v1231, %v1247
      %v1249 = vlaneseq
      %v1250 = vshrl.u32 %v1249, 7
      %v1251 = vsub.s32 4, %v1250
      %v1252 = vrot.slane %v1231, %v1251
      %v1253 = vlaneseq
      %v1254 = vshrl.u32 %v1253, 7
      %v1255 = vsub.s32 5, %v1254
      %v1256 = vrot.slane %v1231, %v1255
      %v1257 = vlaneseq
      %v1258 = vshrl.u32 %v1257, 7
      %v1259 = vsub.s32 6, %v1258
      %v1260 = vrot.slane %v1231, %v1259
      %v1261 = vlaneseq
      %v1262 = vshrl.u32 %v1261, 7
      %v1263 = vsub.s32 7, %v1262
      %v1264 = vrot.slane %v1231, %v1263
      %v1337 = vunpack.c.l.b16 %v1167
      %v1338 = vunpack.c.h.b16 %v1167
      %v1339 = vunpack.c.l.b16 %v1168
      %v1340 = vunpack.c.h.b16 %v1168
      %v1341 = vunpack.c.l.b16 %v1169
      %v1342 = vunpack.c.h.b16 %v1169
      %v1343 = vunpack.c.l.b16 %v1170
      %v1344 = vunpack.c.h.b16 %v1170
      %v1345 = vunpack.c.l.b16 %v1171
      %v1346 = vunpack.c.h.b16 %v1171
      %v1347 = vunpack.c.l.b16 %v1172
      %v1348 = vunpack.c.h.b16 %v1172
      %v1349 = vunpack.c.l.b16 %v1173
      %v1350 = vunpack.c.h.b16 %v1173
      %v1351 = vunpack.c.l.b16 %v1174
      %v1352 = vunpack.c.h.b16 %v1174
      %v1353 = vunpack.c.l.b16 %v1175
      %v1354 = vunpack.c.h.b16 %v1175
      %v1355 = vunpack.c.l.b16 %v1176
      %v1356 = vunpack.c.h.b16 %v1176
      %v1357 = vunpack.c.l.b16 %v1177
      %v1358 = vunpack.c.h.b16 %v1177
      %v1359 = vunpack.c.l.b16 %v1178
      %v1360 = vunpack.c.h.b16 %v1178
      %v1361 = vunpack.c.l.b16 %v1179
      %v1362 = vunpack.c.h.b16 %v1179
      %v1363 = vunpack.c.l.b16 %v1180
      %v1364 = vunpack.c.h.b16 %v1180
      %v1365 = vunpack.c.l.b16 %v1181
      %v1366 = vunpack.c.h.b16 %v1181
      %v1367 = vunpack.c.l.b16 %v1182
      %v1368 = vunpack.c.h.b16 %v1182
      %v1369 = vunpack.c.l.b16 %v1183
      %v1370 = vunpack.c.h.b16 %v1183
      %v1371 = vunpack.c.l.b16 %v1184
      %v1372 = vunpack.c.h.b16 %v1184
      %v1373 = vunpack.c.l.b16 %v1185
      %v1374 = vunpack.c.h.b16 %v1185
      %v1375 = vunpack.c.l.b16 %v1186
      %v1376 = vunpack.c.h.b16 %v1186
      %v1377 = vunpack.c.l.b16 %v1187
      %v1378 = vunpack.c.h.b16 %v1187
      %v1379 = vunpack.c.l.b16 %v1188
      %v1380 = vunpack.c.h.b16 %v1188
      %v1381 = vunpack.c.l.b16 %v1189
      %v1382 = vunpack.c.h.b16 %v1189
      %v1383 = vunpack.c.l.b16 %v1190
      %v1384 = vunpack.c.h.b16 %v1190
      %v1385 = vunpack.c.l.b16 %v1191
      %v1386 = vunpack.c.h.b16 %v1191
      %v1387 = vunpack.c.l.b16 %v1192
      %v1388 = vunpack.c.h.b16 %v1192
      %v1389 = vunpack.c.l.b16 %v1193
      %v1390 = vunpack.c.h.b16 %v1193
      %v1391 = vunpack.c.l.b16 %v1194
      %v1392 = vunpack.c.h.b16 %v1194
      %v1393 = vunpack.c.l.b16 %v1195
      %v1394 = vunpack.c.h.b16 %v1195
      %v1395 = vunpack.c.l.b16 %v1196
      %v1396 = vunpack.c.h.b16 %v1196
      %v1397 = vunpack.c.l.b16 %v1197
      %v1398 = vunpack.c.h.b16 %v1197
      %v1399 = vunpack.c.l.b16 %v1198
      %v1400 = vunpack.c.h.b16 %v1198
      %v1401 = vunpack.c.l.b16 %v1199
      %v1402 = vunpack.c.h.b16 %v1199
      %v1403 = vunpack.c.l.b16 %v1200
      %v1404 = vunpack.c.h.b16 %v1200
      %v1405 = vunpack.c.l.b16 %v1201
      %v1406 = vunpack.c.h.b16 %v1201
      %v1407 = vunpack.c.l.b16 %v1202
      %v1408 = vunpack.c.h.b16 %v1202
      %v1409 = vunpack.c.l.b16 %v1203
      %v1410 = vunpack.c.h.b16 %v1203
      %v1411 = vunpack.c.l.b16 %v1204
      %v1412 = vunpack.c.h.b16 %v1204
      %v1413 = vunpack.c.l.b16 %v1205
      %v1414 = vunpack.c.h.b16 %v1205
      %v1415 = vunpack.c.l.b16 %v1206
      %v1416 = vunpack.c.h.b16 %v1206
      %v1417 = vunpack.c.l.b16 %v1207
      %v1418 = vunpack.c.h.b16 %v1207
      %v1419 = vunpack.c.l.b16 %v1208
      %v1420 = vunpack.c.h.b16 %v1208
      %v1421 = vunpack.c.l.b16 %v1209
      %v1422 = vunpack.c.h.b16 %v1209
      %v1423 = vunpack.c.l.b16 %v1210
      %v1424 = vunpack.c.h.b16 %v1210
      %v1425 = vunpack.c.l.b16 %v1211
      %v1426 = vunpack.c.h.b16 %v1211
      %v1427 = vunpack.c.l.b16 %v1212
      %v1428 = vunpack.c.h.b16 %v1212
      %v1429 = vunpack.c.l.b16 %v1213
      %v1430 = vunpack.c.h.b16 %v1213
      %v1431 = vunpack.c.l.b16 %v1214
      %v1432 = vunpack.c.h.b16 %v1214
      %v1433 = vunpack.c.l.b16 %v1215
      %v1434 = vunpack.c.h.b16 %v1215
      %v1435 = vunpack.c.l.b16 %v1216
      %v1436 = vunpack.c.h.b16 %v1216
      %v1437 = vunpack.c.l.b16 %v1217
      %v1438 = vunpack.c.h.b16 %v1217
      %v1439 = vunpack.c.l.b16 %v1218
      %v1440 = vunpack.c.h.b16 %v1218
      %v1441 = vunpack.c.l.b16 %v1219
      %v1442 = vunpack.c.h.b16 %v1219
      %v1443 = vunpack.c.l.b16 %v1220
      %v1444 = vunpack.c.h.b16 %v1220
      %v1445 = vunpack.c.l.b16 %v1221
      %v1446 = vunpack.c.h.b16 %v1221
      %v1447 = vunpack.c.l.b16 %v1222
      %v1448 = vunpack.c.h.b16 %v1222
      %v1449 = vunpack.c.l.b16 %v1223
      %v1450 = vunpack.c.h.b16 %v1223
      %v1451 = vunpack.c.l.b16 %v1224
      %v1452 = vunpack.c.h.b16 %v1224
      %v1453 = vunpack.c.l.b16 %v1225
      %v1454 = vunpack.c.h.b16 %v1225
      %v1455 = vunpack.c.l.b16 %v1226
      %v1456 = vunpack.c.h.b16 %v1226
      %v1457 = vunpack.c.l.b16 %v1227
      %v1458 = vunpack.c.h.b16 %v1227
      %v1459 = vunpack.c.l.b16 %v1228
      %v1460 = vunpack.c.h.b16 %v1228
      %v1461 = vunpack.c.l.b16 %v1229
      %v1462 = vunpack.c.h.b16 %v1229
      %v1463 = vunpack.c.l.b16 %v1230
      %v1464 = vunpack.c.h.b16 %v1230
      %v1465 = vpack.c.b16 %v1345, %v1337
      %v1466 = vpack.c.b16 %v1346, %v1338
      %v1467 = vpack.c.b16 %v1347, %v1339
      %v1468 = vpack.c.b16 %v1348, %v1340
      %v1469 = vpack.c.b16 %v1349, %v1341
      %v1470 = vpack.c.b16 %v1350, %v1342
      %v1471 = vpack.c.b16 %v1351, %v1343
      %v1472 = vpack.c.b16 %v1352, %v1344
      %v1473 = vpack.c.b16 %v1361, %v1353
      %v1474 = vpack.c.b16 %v1362, %v1354
      %v1475 = vpack.c.b16 %v1363, %v1355
      %v1476 = vpack.c.b16 %v1364, %v1356
      %v1477 = vpack.c.b16 %v1365, %v1357
      %v1478 = vpack.c.b16 %v1366, %v1358
      %v1479 = vpack.c.b16 %v1367, %v1359
      %v1480 = vpack.c.b16 %v1368, %v1360
      %v1481 = vpack.c.b16 %v1377, %v1369
      %v1482 = vpack.c.b16 %v1378, %v1370
      %v1483 = vpack.c.b16 %v1379, %v1371
      %v1484 = vpack.c.b16 %v1380, %v1372
      %v1485 = vpack.c.b16 %v1381, %v1373
      %v1486 = vpack.c.b16 %v1382, %v1374
      %v1487 = vpack.c.b16 %v1383, %v1375
      %v1488 = vpack.c.b16 %v1384, %v1376
      %v1489 = vpack.c.b16 %v1393, %v1385
      %v1490 = vpack.c.b16 %v1394, %v1386
      %v1491 = vpack.c.b16 %v1395, %v1387
      %v1492 = vpack.c.b16 %v1396, %v1388
      %v1493 = vpack.c.b16 %v1397, %v1389
      %v1494 = vpack.c.b16 %v1398, %v1390
      %v1495 = vpack.c.b16 %v1399, %v1391
      %v1496 = vpack.c.b16 %v1400, %v1392
      %v1497 = vpack.c.b16 %v1409, %v1401
      %v1498 = vpack.c.b16 %v1410, %v1402
      %v1499 = vpack.c.b16 %v1411, %v1403
      %v1500 = vpack.c.b16 %v1412, %v1404
      %v1501 = vpack.c.b16 %v1413, %v1405
      %v1502 = vpack.c.b16 %v1414, %v1406
      %v1503 = vpack.c.b16 %v1415, %v1407
      %v1504 = vpack.c.b16 %v1416, %v1408
      %v1505 = vpack.c.b16 %v1425, %v1417
      %v1506 = vpack.c.b16 %v1426, %v1418
      %v1507 = vpack.c.b16 %v1427, %v1419
      %v1508 = vpack.c.b16 %v1428, %v1420
      %v1509 = vpack.c.b16 %v1429, %v1421
      %v1510 = vpack.c.b16 %v1430, %v1422
      %v1511 = vpack.c.b16 %v1431, %v1423
      %v1512 = vpack.c.b16 %v1432, %v1424
      %v1513 = vpack.c.b16 %v1441, %v1433
      %v1514 = vpack.c.b16 %v1442, %v1434
      %v1515 = vpack.c.b16 %v1443, %v1435
      %v1516 = vpack.c.b16 %v1444, %v1436
      %v1517 = vpack.c.b16 %v1445, %v1437
      %v1518 = vpack.c.b16 %v1446, %v1438
      %v1519 = vpack.c.b16 %v1447, %v1439
      %v1520 = vpack.c.b16 %v1448, %v1440
      %v1521 = vpack.c.b16 %v1457, %v1449
      %v1522 = vpack.c.b16 %v1458, %v1450
      %v1523 = vpack.c.b16 %v1459, %v1451
      %v1524 = vpack.c.b16 %v1460, %v1452
      %v1525 = vpack.c.b16 %v1461, %v1453
      %v1526 = vpack.c.b16 %v1462, %v1454
      %v1527 = vpack.c.b16 %v1463, %v1455
      %v1528 = vpack.c.b16 %v1464, %v1456
      %1593 = vmatprep.subr.bf16.mxu0 %v1466
      %1594 = vmatpush1.bf16.msra.mxu0 %v1465
      %1595 = vmatprep.subr.bf16.mxu0 %v1474
      %1596 = vmatpush1.bf16.msra.mxu0 %v1473
      %1597 = vmatprep.subr.bf16.mxu0 %v1482
      %1598 = vmatpush1.bf16.msra.mxu0 %v1481
      %1599 = vmatprep.subr.bf16.mxu0 %v1490
      %1600 = vmatpush1.bf16.msra.mxu0 %v1489
      %1601 = vmatprep.subr.bf16.mxu0 %v1498
      %1602 = vmatpush1.bf16.msra.mxu0 %v1497
      %1603 = vmatprep.subr.bf16.mxu0 %v1506
      %1604 = vmatpush1.bf16.msra.mxu0 %v1505
      %1605 = vmatprep.subr.bf16.mxu0 %v1514
      %1606 = vmatpush1.bf16.msra.mxu0 %v1513
      %1607 = vmatprep.subr.bf16.mxu0 %v1522
      %1608 = vmatpush1.bf16.msra.mxu0 %v1521
      %1609 = vmatprep.subr.bf16.mxu0 0
      %1610 = vmatpush1.bf16.msra.mxu0 0
      %1611 = vmatprep.subr.bf16.mxu0 0
      %1612 = vmatpush1.bf16.msra.mxu0 0
      %1613 = vmatprep.subr.bf16.mxu0 0
      %1614 = vmatpush1.bf16.msra.mxu0 0
      %1615 = vmatprep.subr.bf16.mxu0 0
      %1616 = vmatpush1.bf16.msra.mxu0 0
      %1617 = vmatprep.subr.bf16.mxu0 0
      %1618 = vmatpush1.bf16.msra.mxu0 0
      %1619 = vmatprep.subr.bf16.mxu0 0
      %1620 = vmatpush1.bf16.msra.mxu0 0
      %1621 = vmatprep.subr.bf16.mxu0 0
      %1622 = vmatpush1.bf16.msra.mxu0 0
      %1623 = vmatprep.subr.bf16.mxu0 0
      %1624 = vmatpush1.bf16.msra.mxu0 0
      %1625 = vmatprep.mubr.bf16.mxu0 0
      %1626 = vmatmul.mubr.bf16.gmra.mrb[0].mxu0 %v1166
      %v1627 = vpop.f32.mrb[0].mxu0
      %v1628 = vadd.f32 %v1236, %v1627
      %v1629 = vpop.f32.mrb[0].mxu0
      %v1630 = vadd.f32 %v1240, %v1629
      %v1631 = vpop.f32.mrb[0].mxu0
      %v1632 = vpop.f32.mrb[0].mxu0
      %1633 = vdwg.mxu0
      %1634 = vmatprep.subr.bf16.mxu0 %v1468
      %1635 = vmatpush1.bf16.msra.mxu0 %v1467
      %1636 = vmatprep.subr.bf16.mxu0 %v1476
      %1637 = vmatpush1.bf16.msra.mxu0 %v1475
      %1638 = vmatprep.subr.bf16.mxu0 %v1484
      %1639 = vmatpush1.bf16.msra.mxu0 %v1483
      %1640 = vmatprep.subr.bf16.mxu0 %v1492
      %1641 = vmatpush1.bf16.msra.mxu0 %v1491
      %1642 = vmatprep.subr.bf16.mxu0 %v1500
      %1643 = vmatpush1.bf16.msra.mxu0 %v1499
      %1644 = vmatprep.subr.bf16.mxu0 %v1508
      %1645 = vmatpush1.bf16.msra.mxu0 %v1507
      %1646 = vmatprep.subr.bf16.mxu0 %v1516
      %1647 = vmatpush1.bf16.msra.mxu0 %v1515
      %1648 = vmatprep.subr.bf16.mxu0 %v1524
      %1649 = vmatpush1.bf16.msra.mxu0 %v1523
      %1650 = vmatprep.subr.bf16.mxu0 0
      %1651 = vmatpush1.bf16.msra.mxu0 0
      %1652 = vmatprep.subr.bf16.mxu0 0
      %1653 = vmatpush1.bf16.msra.mxu0 0
      %1654 = vmatprep.subr.bf16.mxu0 0
      %1655 = vmatpush1.bf16.msra.mxu0 0
      %1656 = vmatprep.subr.bf16.mxu0 0
      %1657 = vmatpush1.bf16.msra.mxu0 0
      %1658 = vmatprep.subr.bf16.mxu0 0
      %1659 = vmatpush1.bf16.msra.mxu0 0
      %1660 = vmatprep.subr.bf16.mxu0 0
      %1661 = vmatpush1.bf16.msra.mxu0 0
      %1662 = vmatprep.subr.bf16.mxu0 0
      %1663 = vmatpush1.bf16.msra.mxu0 0
      %1664 = vmatprep.subr.bf16.mxu0 0
      %1665 = vmatpush1.bf16.msra.mxu0 0
      %1666 = vmatprep.mubr.bf16.mxu0 0
      %1667 = vmatmul.mubr.bf16.gmra.mrb[0].mxu0 %v1166
      %v1668 = vpop.f32.mrb[0].mxu0
      %v1669 = vadd.f32 %v1244, %v1668
      %v1670 = vpop.f32.mrb[0].mxu0
      %v1671 = vadd.f32 %v1248, %v1670
      %v1672 = vpop.f32.mrb[0].mxu0
      %v1673 = vpop.f32.mrb[0].mxu0
      %1674 = vdwg.mxu0
      %1675 = vmatprep.subr.bf16.mxu0 %v1470
      %1676 = vmatpush1.bf16.msra.mxu0 %v1469
      %1677 = vmatprep.subr.bf16.mxu0 %v1478
      %1678 = vmatpush1.bf16.msra.mxu0 %v1477
      %1679 = vmatprep.subr.bf16.mxu0 %v1486
      %1680 = vmatpush1.bf16.msra.mxu0 %v1485
      %1681 = vmatprep.subr.bf16.mxu0 %v1494
      %1682 = vmatpush1.bf16.msra.mxu0 %v1493
      %1683 = vmatprep.subr.bf16.mxu0 %v1502
      %1684 = vmatpush1.bf16.msra.mxu0 %v1501
      %1685 = vmatprep.subr.bf16.mxu0 %v1510
      %1686 = vmatpush1.bf16.msra.mxu0 %v1509
      %1687 = vmatprep.subr.bf16.mxu0 %v1518
      %1688 = vmatpush1.bf16.msra.mxu0 %v1517
      %1689 = vmatprep.subr.bf16.mxu0 %v1526
      %1690 = vmatpush1.bf16.msra.mxu0 %v1525
      %1691 = vmatprep.subr.bf16.mxu0 0
      %1692 = vmatpush1.bf16.msra.mxu0 0
      %1693 = vmatprep.subr.bf16.mxu0 0
      %1694 = vmatpush1.bf16.msra.mxu0 0
      %1695 = vmatprep.subr.bf16.mxu0 0
      %1696 = vmatpush1.bf16.msra.mxu0 0
      %1697 = vmatprep.subr.bf16.mxu0 0
      %1698 = vmatpush1.bf16.msra.mxu0 0
      %1699 = vmatprep.subr.bf16.mxu0 0
      %1700 = vmatpush1.bf16.msra.mxu0 0
      %1701 = vmatprep.subr.bf16.mxu0 0
      %1702 = vmatpush1.bf16.msra.mxu0 0
      %1703 = vmatprep.subr.bf16.mxu0 0
      %1704 = vmatpush1.bf16.msra.mxu0 0
      %1705 = vmatprep.subr.bf16.mxu0 0
      %1706 = vmatpush1.bf16.msra.mxu0 0
      %1707 = vmatprep.mubr.bf16.mxu0 0
      %1708 = vmatmul.mubr.bf16.gmra.mrb[0].mxu0 %v1166
      %v1709 = vpop.f32.mrb[0].mxu0
      %v1710 = vadd.f32 %v1252, %v1709
      %v1711 = vpop.f32.mrb[0].mxu0
      %v1712 = vadd.f32 %v1256, %v1711
      %v1713 = vpop.f32.mrb[0].mxu0
      %v1714 = vpop.f32.mrb[0].mxu0
      %1715 = vdwg.mxu0
      %1716 = vmatprep.subr.bf16.mxu0 %v1472
      %1717 = vmatpush1.bf16.msra.mxu0 %v1471
      %1718 = vmatprep.subr.bf16.mxu0 %v1480
      %1719 = vmatpush1.bf16.msra.mxu0 %v1479
      %1720 = vmatprep.subr.bf16.mxu0 %v1488
      %1721 = vmatpush1.bf16.msra.mxu0 %v1487
      %1722 = vmatprep.subr.bf16.mxu0 %v1496
      %1723 = vmatpush1.bf16.msra.mxu0 %v1495
      %1724 = vmatprep.subr.bf16.mxu0 %v1504
      %1725 = vmatpush1.bf16.msra.mxu0 %v1503
      %1726 = vmatprep.subr.bf16.mxu0 %v1512
      %1727 = vmatpush1.bf16.msra.mxu0 %v1511
      %1728 = vmatprep.subr.bf16.mxu0 %v1520
      %1729 = vmatpush1.bf16.msra.mxu0 %v1519
      %1730 = vmatprep.subr.bf16.mxu0 %v1528
      %1731 = vmatpush1.bf16.msra.mxu0 %v1527
      %1732 = vmatprep.subr.bf16.mxu0 0
      %1733 = vmatpush1.bf16.msra.mxu0 0
      %1734 = vmatprep.subr.bf16.mxu0 0
      %1735 = vmatpush1.bf16.msra.mxu0 0
      %1736 = vmatprep.subr.bf16.mxu0 0
      %1737 = vmatpush1.bf16.msra.mxu0 0
      %1738 = vmatprep.subr.bf16.mxu0 0
      %1739 = vmatpush1.bf16.msra.mxu0 0
      %1740 = vmatprep.subr.bf16.mxu0 0
      %1741 = vmatpush1.bf16.msra.mxu0 0
      %1742 = vmatprep.subr.bf16.mxu0 0
      %1743 = vmatpush1.bf16.msra.mxu0 0
      %1744 = vmatprep.subr.bf16.mxu0 0
      %1745 = vmatpush1.bf16.msra.mxu0 0
      %1746 = vmatprep.subr.bf16.mxu0 0
      %1747 = vmatpush1.bf16.msra.mxu0 0
      %1748 = vmatprep.mubr.bf16.mxu0 0
      %1749 = vmatmul.mubr.bf16.gmra.mrb[0].mxu0 %v1166
      %v1750 = vpop.f32.mrb[0].mxu0
      %v1751 = vadd.f32 %v1260, %v1750
      %v1752 = vpop.f32.mrb[0].mxu0
      %v1753 = vadd.f32 %v1264, %v1752
      %v1754 = vpop.f32.mrb[0].mxu0
      %v1755 = vpop.f32.mrb[0].mxu0
      %1756 = vdwg.mxu0
      %s1757 = scalar_lea.vmem [#allocation11], 1
      %v1758 = vld [vmem:[%s1757] ss:$4 sm:$0xff]
      %s1759 = scalar_lea.vmem [#allocation11], 2
      %v1760 = vld [vmem:[%s1759] ss:$4 sm:$0xff]
      %v1761 = vrot.slane %v1628, 4
      %v1762 = vadd.f32 %v1628, %v1761
      %v1763 = vrot.slane %v1762, 2
      %v1764 = vadd.f32 %v1762, %v1763
      %v1765 = vrot.slane %v1764, 1
      %v1766 = vadd.f32 %v1764, %v1765
      %v1767 = vrot.slane %v1630, 4
      %v1768 = vadd.f32 %v1630, %v1767
      %v1769 = vrot.slane %v1768, 2
      %v1770 = vadd.f32 %v1768, %v1769
      %v1771 = vrot.slane %v1770, 1
      %v1772 = vadd.f32 %v1770, %v1771
      %v1773 = vrot.slane %v1669, 4
      %v1774 = vadd.f32 %v1669, %v1773
      %v1775 = vrot.slane %v1774, 2
      %v1776 = vadd.f32 %v1774, %v1775
      %v1777 = vrot.slane %v1776, 1
      %v1778 = vadd.f32 %v1776, %v1777
      %v1779 = vrot.slane %v1671, 4
      %v1780 = vadd.f32 %v1671, %v1779
      %v1781 = vrot.slane %v1780, 2
      %v1782 = vadd.f32 %v1780, %v1781
      %v1783 = vrot.slane %v1782, 1
      %v1784 = vadd.f32 %v1782, %v1783
      %v1785 = vrot.slane %v1710, 4
      %v1786 = vadd.f32 %v1710, %v1785
      %v1787 = vrot.slane %v1786, 2
      %v1788 = vadd.f32 %v1786, %v1787
      %v1789 = vrot.slane %v1788, 1
      %v1790 = vadd.f32 %v1788, %v1789
      %v1791 = vrot.slane %v1712, 4
      %v1792 = vadd.f32 %v1712, %v1791
      %v1793 = vrot.slane %v1792, 2
      %v1794 = vadd.f32 %v1792, %v1793
      %v1795 = vrot.slane %v1794, 1
      %v1796 = vadd.f32 %v1794, %v1795
      %v1797 = vrot.slane %v1751, 4
      %v1798 = vadd.f32 %v1751, %v1797
      %v1799 = vrot.slane %v1798, 2
      %v1800 = vadd.f32 %v1798, %v1799
      %v1801 = vrot.slane %v1800, 1
      %v1802 = vadd.f32 %v1800, %v1801
      %v1803 = vrot.slane %v1753, 4
      %v1804 = vadd.f32 %v1753, %v1803
      %v1805 = vrot.slane %v1804, 2
      %v1806 = vadd.f32 %v1804, %v1805
      %v1807 = vrot.slane %v1806, 1
      %v1808 = vadd.f32 %v1806, %v1807
      %v1809 = vmul.f32 %v1766, %v1104
      %v1810 = vmul.f32 %v1772, %v1104
      %v1811 = vmul.f32 %v1778, %v1104
      %v1812 = vmul.f32 %v1784, %v1104
      %v1813 = vmul.f32 %v1790, %v1104
      %v1814 = vmul.f32 %v1796, %v1104
      %v1815 = vmul.f32 %v1802, %v1104
      %v1816 = vmul.f32 %v1808, %v1104
      %v1817 = vsub.f32 %v1628, %v1809
      %v1818 = vsub.f32 %v1630, %v1810
      %v1819 = vsub.f32 %v1669, %v1811
      %v1820 = vsub.f32 %v1671, %v1812
      %v1821 = vsub.f32 %v1710, %v1813
      %v1822 = vsub.f32 %v1712, %v1814
      %v1823 = vsub.f32 %v1751, %v1815
      %v1824 = vsub.f32 %v1753, %v1816
      %v1825 = vmul.f32 %v1817, %v1817
      %v1826 = vmul.f32 %v1818, %v1818
      %v1827 = vmul.f32 %v1819, %v1819
      %v1828 = vmul.f32 %v1820, %v1820
      %v1829 = vmul.f32 %v1821, %v1821
      %v1830 = vmul.f32 %v1822, %v1822
      %v1831 = vmul.f32 %v1823, %v1823
      %v1832 = vmul.f32 %v1824, %v1824
      %v1833 = vrot.slane %v1825, 4
      %v1834 = vadd.f32 %v1825, %v1833
      %v1835 = vrot.slane %v1834, 2
      %v1836 = vadd.f32 %v1834, %v1835
      %v1837 = vrot.slane %v1836, 1
      %v1838 = vadd.f32 %v1836, %v1837
      %v1839 = vrot.slane %v1826, 4
      %v1840 = vadd.f32 %v1826, %v1839
      %v1841 = vrot.slane %v1840, 2
      %v1842 = vadd.f32 %v1840, %v1841
      %v1843 = vrot.slane %v1842, 1
      %v1844 = vadd.f32 %v1842, %v1843
      %v1845 = vrot.slane %v1827, 4
      %v1846 = vadd.f32 %v1827, %v1845
      %v1847 = vrot.slane %v1846, 2
      %v1848 = vadd.f32 %v1846, %v1847
      %v1849 = vrot.slane %v1848, 1
      %v1850 = vadd.f32 %v1848, %v1849
      %v1851 = vrot.slane %v1828, 4
      %v1852 = vadd.f32 %v1828, %v1851
      %v1853 = vrot.slane %v1852, 2
      %v1854 = vadd.f32 %v1852, %v1853
      %v1855 = vrot.slane %v1854, 1
      %v1856 = vadd.f32 %v1854, %v1855
      %v1857 = vrot.slane %v1829, 4
      %v1858 = vadd.f32 %v1829, %v1857
      %v1859 = vrot.slane %v1858, 2
      %v1860 = vadd.f32 %v1858, %v1859
      %v1861 = vrot.slane %v1860, 1
      %v1862 = vadd.f32 %v1860, %v1861
      %v1863 = vrot.slane %v1830, 4
      %v1864 = vadd.f32 %v1830, %v1863
      %v1865 = vrot.slane %v1864, 2
      %v1866 = vadd.f32 %v1864, %v1865
      %v1867 = vrot.slane %v1866, 1
      %v1868 = vadd.f32 %v1866, %v1867
      %v1869 = vrot.slane %v1831, 4
      %v1870 = vadd.f32 %v1831, %v1869
      %v1871 = vrot.slane %v1870, 2
      %v1872 = vadd.f32 %v1870, %v1871
      %v1873 = vrot.slane %v1872, 1
      %v1874 = vadd.f32 %v1872, %v1873
      %v1875 = vrot.slane %v1832, 4
      %v1876 = vadd.f32 %v1832, %v1875
      %v1877 = vrot.slane %v1876, 2
      %v1878 = vadd.f32 %v1876, %v1877
      %v1879 = vrot.slane %v1878, 1
      %v1880 = vadd.f32 %v1878, %v1879
      %v1881 = vmul.f32 %v1838, %v1104
      %v1882 = vmul.f32 %v1844, %v1104
      %v1883 = vmul.f32 %v1850, %v1104
      %v1884 = vmul.f32 %v1856, %v1104
      %v1885 = vmul.f32 %v1862, %v1104
      %v1886 = vmul.f32 %v1868, %v1104
      %v1887 = vmul.f32 %v1874, %v1104
      %v1888 = vmul.f32 %v1880, %v1104
      %v1890 = vlaneseq
      %v1891 = vshrl.u32 %v1890, 7
      %v1892 = vsub.s32 0, %v1891
      %v1893 = vrot.slane %v1758, %v1892
      %v1894 = vlaneseq
      %v1895 = vshrl.u32 %v1894, 7
      %v1896 = vsub.s32 1, %v1895
      %v1897 = vrot.slane %v1758, %v1896
      %v1898 = vlaneseq
      %v1899 = vshrl.u32 %v1898, 7
      %v1900 = vsub.s32 2, %v1899
      %v1901 = vrot.slane %v1758, %v1900
      %v1902 = vlaneseq
      %v1903 = vshrl.u32 %v1902, 7
      %v1904 = vsub.s32 3, %v1903
      %v1905 = vrot.slane %v1758, %v1904
      %v1906 = vlaneseq
      %v1907 = vshrl.u32 %v1906, 7
      %v1908 = vsub.s32 4, %v1907
      %v1909 = vrot.slane %v1758, %v1908
      %v1910 = vlaneseq
      %v1911 = vshrl.u32 %v1910, 7
      %v1912 = vsub.s32 5, %v1911
      %v1913 = vrot.slane %v1758, %v1912
      %v1914 = vlaneseq
      %v1915 = vshrl.u32 %v1914, 7
      %v1916 = vsub.s32 6, %v1915
      %v1917 = vrot.slane %v1758, %v1916
      %v1918 = vlaneseq
      %v1919 = vshrl.u32 %v1918, 7
      %v1920 = vsub.s32 7, %v1919
      %v1921 = vrot.slane %v1758, %v1920
      %v1930 = vmul.f32 %v1893, %v1817
      %v1931 = vmul.f32 %v1897, %v1818
      %v1932 = vmul.f32 %v1901, %v1819
      %v1933 = vmul.f32 %v1905, %v1820
      %v1934 = vmul.f32 %v1909, %v1821
      %v1935 = vmul.f32 %v1913, %v1822
      %v1936 = vmul.f32 %v1917, %v1823
      %v1937 = vmul.f32 %v1921, %v1824
      %v1938 = vadd.f32 %v1881, 1e-05
      %v1939 = vadd.f32 %v1882, 1e-05
      %v1940 = vadd.f32 %v1883, 1e-05
      %v1941 = vadd.f32 %v1884, 1e-05
      %v1942 = vadd.f32 %v1885, 1e-05
      %v1943 = vadd.f32 %v1886, 1e-05
      %v1944 = vadd.f32 %v1887, 1e-05
      %v1945 = vadd.f32 %v1888, 1e-05
      %v1946 = vrsqrt.pop %v1938
      %v1947 = vrsqrt.pop %v1939
      %v1948 = vrsqrt.pop %v1940
      %v1949 = vrsqrt.pop %v1941
      %v1950 = vrsqrt.pop %v1942
      %v1951 = vrsqrt.pop %v1943
      %v1952 = vrsqrt.pop %v1944
      %v1953 = vrsqrt.pop %v1945
      %v1954 = vmul.f32 %v1930, %v1946
      %v1955 = vmul.f32 %v1931, %v1947
      %v1956 = vmul.f32 %v1932, %v1948
      %v1957 = vmul.f32 %v1933, %v1949
      %v1958 = vmul.f32 %v1934, %v1950
      %v1959 = vmul.f32 %v1935, %v1951
      %v1960 = vmul.f32 %v1936, %v1952
      %v1961 = vmul.f32 %v1937, %v1953
      %v1963 = vlaneseq
      %v1964 = vshrl.u32 %v1963, 7
      %v1965 = vsub.s32 0, %v1964
      %v1966 = vrot.slane %v1760, %v1965
      %v1967 = vlaneseq
      %v1968 = vshrl.u32 %v1967, 7
      %v1969 = vsub.s32 1, %v1968
      %v1970 = vrot.slane %v1760, %v1969
      %v1971 = vlaneseq
      %v1972 = vshrl.u32 %v1971, 7
      %v1973 = vsub.s32 2, %v1972
      %v1974 = vrot.slane %v1760, %v1973
      %v1975 = vlaneseq
      %v1976 = vshrl.u32 %v1975, 7
      %v1977 = vsub.s32 3, %v1976
      %v1978 = vrot.slane %v1760, %v1977
      %v1979 = vlaneseq
      %v1980 = vshrl.u32 %v1979, 7
      %v1981 = vsub.s32 4, %v1980
      %v1982 = vrot.slane %v1760, %v1981
      %v1983 = vlaneseq
      %v1984 = vshrl.u32 %v1983, 7
      %v1985 = vsub.s32 5, %v1984
      %v1986 = vrot.slane %v1760, %v1985
      %v1987 = vlaneseq
      %v1988 = vshrl.u32 %v1987, 7
      %v1989 = vsub.s32 6, %v1988
      %v1990 = vrot.slane %v1760, %v1989
      %v1991 = vlaneseq
      %v1992 = vshrl.u32 %v1991, 7
      %v1993 = vsub.s32 7, %v1992
      %v1994 = vrot.slane %v1760, %v1993
      %v2003 = vadd.f32 %v1954, %v1966
      %v2004 = vadd.f32 %v1955, %v1970
      %v2005 = vadd.f32 %v1956, %v1974
      %v2006 = vadd.f32 %v1957, %v1978
      %v2007 = vadd.f32 %v1958, %v1982
      %v2008 = vadd.f32 %v1959, %v1986
      %v2009 = vadd.f32 %v1960, %v1990
      %v2010 = vadd.f32 %v1961, %v1994
      %v2011 = vxor.u32 %v2003, 2147483648
      %v2012 = vxor.u32 %v2004, 2147483648
      %v2013 = vxor.u32 %v2005, 2147483648
      %v2014 = vxor.u32 %v2006, 2147483648
      %v2015 = vxor.u32 %v2007, 2147483648
      %v2016 = vxor.u32 %v2008, 2147483648
      %v2017 = vxor.u32 %v2009, 2147483648
      %v2018 = vxor.u32 %v2010, 2147483648
      %v2019 = vmul.f32 %v2011, 1.442695
      %v2020 = vpow.pop %v2019
      %v2021 = vmul.f32 %v2012, 1.442695
      %v2022 = vpow.pop %v2021
      %v2023 = vmul.f32 %v2013, 1.442695
      %v2024 = vpow.pop %v2023
      %v2025 = vmul.f32 %v2014, 1.442695
      %v2026 = vpow.pop %v2025
      %v2027 = vmul.f32 %v2015, 1.442695
      %v2028 = vpow.pop %v2027
      %v2029 = vmul.f32 %v2016, 1.442695
      %v2030 = vpow.pop %v2029
      %v2031 = vmul.f32 %v2017, 1.442695
      %v2032 = vpow.pop %v2031
      %v2033 = vmul.f32 %v2018, 1.442695
      %v2034 = vpow.pop %v2033
      %v2035 = vadd.f32 %v2020, 1.0
      %v2036 = vadd.f32 %v2022, 1.0
      %v2037 = vadd.f32 %v2024, 1.0
      %v2038 = vadd.f32 %v2026, 1.0
      %v2039 = vadd.f32 %v2028, 1.0
      %v2040 = vadd.f32 %v2030, 1.0
      %v2041 = vadd.f32 %v2032, 1.0
      %v2042 = vadd.f32 %v2034, 1.0
      %v2043 = vrcp.pop %v2035
      %v2044 = vmul.f32 1.0, %v2043
      %v2045 = vrcp.pop %v2036
      %v2046 = vmul.f32 1.0, %v2045
      %v2047 = vrcp.pop %v2037
      %v2048 = vmul.f32 1.0, %v2047
      %v2049 = vrcp.pop %v2038
      %v2050 = vmul.f32 1.0, %v2049
      %v2051 = vrcp.pop %v2039
      %v2052 = vmul.f32 1.0, %v2051
      %v2053 = vrcp.pop %v2040
      %v2054 = vmul.f32 1.0, %v2053
      %v2055 = vrcp.pop %v2041
      %v2056 = vmul.f32 1.0, %v2055
      %v2057 = vrcp.pop %v2042
      %v2058 = vmul.f32 1.0, %v2057
      %2059 = vst [vmem:[#allocation16] sm:$0xff] %v2044
      %2060 = vst [vmem:[#allocation16 + $0x8] sm:$0xff] %v2046
      %2061 = vst [vmem:[#allocation16 + $0x10] sm:$0xff] %v2048
      %2062 = vst [vmem:[#allocation16 + $0x18] sm:$0xff] %v2050
      %2063 = vst [vmem:[#allocation16 + $0x20] sm:$0xff] %v2052
      %2064 = vst [vmem:[#allocation16 + $0x28] sm:$0xff] %v2054
      %2065 = vst [vmem:[#allocation16 + $0x30] sm:$0xff] %v2056
      %vm2066 = vcmask 850944
      %2067 = vst.msk [vmem:[#allocation16 + $0x38] sm:$0xff] %vm2066, %v2058
    $region53: #{tpu_custom_call.1} parent=1 // pred_fallthru
      _
    // Predicated region
    $region54: #{tpu_custom_call.1} parent=1 // pred_check
      _
    $region55: #{tpu_custom_call.1} parent=1 // pred_check_branch
      %2069 = sbr.rel (0) target = $region57
    $region56: #{tpu_custom_call.1} parent=1 // pred_region
      %s2071 = ssub.s32 128, 128
      %2072 = vsyncadd [#allocation5], %s2071
      %s2074 = sshll.u32 [#allocation12], 4
      %s2075 = int_to_ptr.vmem [resolvable:$true] %s2074
      %2077 = dma.vmem_to_hbm [thread:$0]  %s2075, 128, %s6, [#allocation5]
    $region57: #{tpu_custom_call.1} parent=1 // pred_fallthru
      _
    // Predicated region
    $region58: #{tpu_custom_call.1} parent=1 // pred_check
      _
    $region59: #{tpu_custom_call.1} parent=1 // pred_check_branch
      %2079 = sbr.rel (0) target = $region61
    $region60: #{tpu_custom_call.1} parent=1 // pred_region
      %s2081 = ssub.s32 128, 128
      %2082 = vsyncadd [#allocation14], %s2081
      %s2084 = sshll.u32 [#allocation13], 4
      %s2085 = int_to_ptr.vmem [resolvable:$true] %s2084
      %2087 = dma.vmem_to_hbm [thread:$0]  %s2085, 128, %s7, [#allocation14]
    $region61: #{tpu_custom_call.1} parent=1 // pred_fallthru
      _
    // Predicated region
    $region62: #{tpu_custom_call.1} parent=1 // pred_check
      _
    $region63: #{tpu_custom_call.1} parent=1 // pred_check_branch
      %2089 = sbr.rel (0) target = $region65
    $region64: #{tpu_custom_call.1} parent=1 // pred_region
      %s2091 = ssub.s32 128, 128
      %2092 = vsyncadd [#allocation14], %s2091
      %s2094 = sshll.u32 [#allocation15], 4
      %s2095 = int_to_ptr.vmem [resolvable:$true] %s2094
      %2097 = dma.vmem_to_hbm [thread:$0]  %s2095, 128, %s8, [#allocation14]
    $region65: #{tpu_custom_call.1} parent=1 // pred_fallthru
      _
    // Predicated region
    $region66: #{tpu_custom_call.1} parent=1 // pred_check
      _
    $region67: #{tpu_custom_call.1} parent=1 // pred_check_branch
      %2099 = sbr.rel (0) target = $region69
    $region68: #{tpu_custom_call.1} parent=1 // pred_region
      %s2101 = ssub.s32 1024, 1024
      %2102 = vsyncadd [#allocation17], %s2101
      %s2104 = sshll.u32 [#allocation16], 4
      %s2105 = int_to_ptr.vmem [resolvable:$true] %s2104
      %2107 = dma.vmem_to_hbm [thread:$0]  %s2105, 1024, %s9, [#allocation17]
    $region69: #{tpu_custom_call.1} parent=1 // pred_fallthru
      _
    // Predicated region
    $region70: #{tpu_custom_call.1} parent=1 // pred_check
      _
    $region71: #{tpu_custom_call.1} parent=1 // pred_check_branch
      %2109 = sbr.rel (0) target = $region73
    $region72: #{tpu_custom_call.1} parent=1 // pred_region
      %2110 = dma.done [#allocation5], 128
    $region73: #{tpu_custom_call.1} parent=1 // pred_fallthru
      _
    // Predicated region
    $region74: #{tpu_custom_call.1} parent=1 // pred_check
      _
    $region75: #{tpu_custom_call.1} parent=1 // pred_check_branch
      %2112 = sbr.rel (0) target = $region77
    $region76: #{tpu_custom_call.1} parent=1 // pred_region
      %2113 = dma.done [#allocation14], 128
    $region77: #{tpu_custom_call.1} parent=1 // pred_fallthru
      _
    // Predicated region
    $region78: #{tpu_custom_call.1} parent=1 // pred_check
      _
    $region79: #{tpu_custom_call.1} parent=1 // pred_check_branch
      %2115 = sbr.rel (0) target = $region81
    $region80: #{tpu_custom_call.1} parent=1 // pred_region
      %2116 = dma.done [#allocation14], 128
    $region81: #{tpu_custom_call.1} parent=1 // pred_fallthru
      _
    // Predicated region
    $region82: #{tpu_custom_call.1} parent=1 // pred_check
      _
    $region83: #{tpu_custom_call.1} parent=1 // pred_check_branch
      %2118 = sbr.rel (0) target = $region85
    $region84: #{tpu_custom_call.1} parent=1 // pred_region
      %2119 = dma.done [#allocation17], 1024
    $region85: #{tpu_custom_call.1} parent=1 // pred_fallthru
      _
    %2120 = vsyncpa [#allocation4], 1
    %2121 = vsyncpa [#allocation7], 1
    %2122 = vsyncpa [#allocation10], 1
    %2123 = vsyncpa [#allocation5], 1
    %2124 = vsyncpa [#allocation14], 1
    %2125 = vsyncpa [#allocation17], 1

</llo_original>
